<compile_context>
chip_gen: v5e
topology: v5e:2x2
jax: 0.10.0
libtpu: 0.0.40
codegen_flags: <defaults>
</compile_context>

<pallas_src>
import functools
import math

import jax
import jax.numpy as jnp
from jax.experimental import pallas as pl
from jax.experimental.pallas import tpu as pltpu

# ----- small synthetic roberta-base-like config -----
VOCAB = 100
HIDDEN = 32
HEADS = 4
HEAD_DIM = HIDDEN // HEADS
INTERMEDIATE = 64
LAYERS = 2
MAX_POS = 32
FEATURE_DIM = 16
NUM_LABELS = 2
LN_EPS = 1e-5
PAD_IDX = 1          # roberta padding idx (position-id offset)
NEG_INF = -1e9


# ---------------------------------------------------------------- in-kernel math helpers
def _ln(x, g, b):
    mean = jnp.mean(x, axis=-1, keepdims=True)
    var = jnp.mean(jnp.square(x - mean), axis=-1, keepdims=True)
    return (x - mean) * jax.lax.rsqrt(var + LN_EPS) * g + b


def _erf_approx(x):
    # Abramowitz & Stegun 7.1.26, |error| < 1.5e-7 (float32-exact for GELU).
    # TODO(synk): uses a polynomial erf instead of lax.erf to guarantee Mosaic lowering.
    p = 0.3275911
    a1, a2, a3, a4, a5 = (0.254829592, -0.284496736, 1.421413741,
                          -1.453152027, 1.061405429)
    ax = jnp.abs(x)
    t = 1.0 / (1.0 + p * ax)
    poly = ((((a5 * t + a4) * t + a3) * t + a2) * t + a1) * t
    y = 1.0 - poly * jnp.exp(-ax * ax)
    return jnp.where(x < 0.0, -y, y)


def _gelu_exact(x):
    # exact (erf) GELU, matching RobertaIntermediate's default activation
    return 0.5 * x * (1.0 + _erf_approx(x * (1.0 / math.sqrt(2.0))))


# ---------------------------------------------------------------- fully fused model kernel
def _model_kernel(emb_ref, mask_ref, eg_ref, eb_ref,
                  qkvw_ref, qkvb_ref, aow_ref, aob_ref, ag_ref, ab_ref,
                  iw_ref, ib_ref, ow_ref, ob_ref, fg_ref, fb_ref,
                  feat_ref, fw_ref, fbias_ref, cw_ref, cb_ref,
                  logits_ref, x_ref, *, B, S):
    """One grid step == one RobertaLayer. x_ref (VMEM scratch) carries the
    hidden state [B*S, H] across layers; step 0 also applies the embedding LN;
    the last step additionally runs the classification head and writes the
    only HBM output (logits)."""
    l = pl.program_id(0)

    @pl.when(l == 0)
    def _():
        x_ref[...] = _ln(emb_ref[...], eg_ref[...], eb_ref[...])

    x = x_ref[...]                                             # [B*S, H]

    # ---- fused QKV projection: one [H, 3H] matmul ----
    qkv = jnp.dot(x, qkvw_ref[...],
                  preferred_element_type=jnp.float32) + qkvb_ref[...]   # [B*S, 3H]

    # ---- additive mask built in-register from the [B, S] attention mask ----
    bias = (1.0 - mask_ref[...]) * NEG_INF                     # [B, S]

    scale = 1.0 / math.sqrt(HEAD_DIM)
    batch_ctx = []
    for b in range(B):                                         # static, tiny
        bias_b = bias[b:b + 1, :]                              # [1, S]
        head_ctx = []
        for h in range(HEADS):                                 # static, tiny
            q = qkv[b * S:(b + 1) * S, h * HEAD_DIM:(h + 1) * HEAD_DIM]
            k = qkv[b * S:(b + 1) * S,
                    HIDDEN + h * HEAD_DIM:HIDDEN + (h + 1) * HEAD_DIM]
            v = qkv[b * S:(b + 1) * S,
                    2 * HIDDEN + h * HEAD_DIM:2 * HIDDEN + (h + 1) * HEAD_DIM]
            s = jnp.einsum("qd,kd->qk", q, k,
                           preferred_element_type=jnp.float32)          # [S, S]
            s = s * scale + bias_b
            m = jnp.max(s, axis=-1, keepdims=True)
            p = jnp.exp(s - m)
            p = p / jnp.sum(p, axis=-1, keepdims=True)
            head_ctx.append(jnp.dot(p, v, preferred_element_type=jnp.float32))
        batch_ctx.append(jnp.concatenate(head_ctx, axis=-1))   # [S, H]
    ctx = jnp.concatenate(batch_ctx, axis=0)                   # [B*S, H]

    # ---- attention output projection + residual + LN ----
    attn_out = jnp.dot(ctx, aow_ref[...],
                       preferred_element_type=jnp.float32) + aob_ref[...]
    x = _ln(attn_out + x, ag_ref[...], ab_ref[...])

    # ---- FFN with fused exact GELU + residual + LN ----
    inter = jnp.dot(x, iw_ref[...],
                    preferred_element_type=jnp.float32) + ib_ref[...]
    inter = _gelu_exact(inter)
    ffn_out = jnp.dot(inter, ow_ref[...],
                      preferred_element_type=jnp.float32) + ob_ref[...]
    x = _ln(ffn_out + x, fg_ref[...], fb_ref[...])

    x_ref[...] = x

    # ---- head folded into the last layer step: CLS slice + feature_dense
    #      + split-weight classifier. Only HBM write of the whole kernel. ----
    @pl.when(l == pl.num_programs(0) - 1)
    def _():
        cls_tok = jnp.concatenate(
            [x[b * S:b * S + 1, :] for b in range(B)], axis=0)          # [B, H]
        feat_emb = jnp.dot(feat_ref[...], fw_ref[...],
                           preferred_element_type=jnp.float32) + fbias_ref[...]
        w_text = cw_ref[0:HIDDEN, :]
        w_feat = cw_ref[HIDDEN:2 * HIDDEN, :]
        logits_ref[...] = (
            jnp.dot(cls_tok, w_text, preferred_element_type=jnp.float32)
            + jnp.dot(feat_emb, w_feat, preferred_element_type=jnp.float32)
            + cb_ref[...])


def hybrid_model(emb, mask_f, emb_ln_g, emb_ln_b, enc,
                 feats, feat_w, feat_b, cls_w, cls_b, *, B, S):
    """emb: [B*S, H] pre-LN embedding sum, mask_f: [B, S] float mask.
    Returns logits [B, NUM_LABELS]."""
    M, H = emb.shape
    L = enc["qkv_w"].shape[0]
    I = enc["i_w"].shape[2]
    H3 = 3 * H
    F = feats.shape[1]
    NL = cls_w.shape[1]

    def rep(shape):                     # replicated operand, same block each step
        return pl.BlockSpec(shape, lambda l: (0, 0))

    def per_layer(d1, d2):              # layer-sliced stacked weight
        return pl.BlockSpec((None, d1, d2), lambda l: (l, 0, 0))

    kern = functools.partial(_model_kernel, B=B, S=S)
    return pl.pallas_call(
        kern,
        out_shape=jax.ShapeDtypeStruct((B, NL), jnp.float32),
        grid=(L,),
        in_specs=[
            rep((M, H)),                       # emb
            rep((B, S)),                       # attention mask (float)
            rep((1, H)), rep((1, H)),          # embedding LN
            per_layer(H, H3), per_layer(1, H3),    # fused QKV
            per_layer(H, H), per_layer(1, H),      # attn out proj
            per_layer(1, H), per_layer(1, H),      # attn LN
            per_layer(H, I), per_layer(1, I),      # FFN in
            per_layer(I, H), per_layer(1, H),      # FFN out
            per_layer(1, H), per_layer(1, H),      # FFN LN
            rep((B, F)),                       # features
            rep((F, H)), rep((1, H)),          # feature_dense
            rep((2 * H, NL)), rep((1, NL)),    # classifier
        ],
        out_specs=pl.BlockSpec((B, NL), lambda l: (0, 0)),
        scratch_shapes=[pltpu.VMEM((M, H), jnp.float32)],
        compiler_params=pltpu.CompilerParams(
            dimension_semantics=("arbitrary",)),   # layers form a sequential carry
    )(emb, mask_f, emb_ln_g.reshape(1, H), emb_ln_b.reshape(1, H),
      enc["qkv_w"], enc["qkv_b"], enc["ao_w"], enc["ao_b"],
      enc["attn_ln_g"], enc["attn_ln_b"],
      enc["i_w"], enc["i_b"], enc["o_w"], enc["o_b"],
      enc["ffn_ln_g"], enc["ffn_ln_b"],
      feats, feat_w, feat_b.reshape(1, H), cls_w, cls_b.reshape(1, NL))


# ---------------------------------------------------------------- parameters
def init_params(key):
    keys = iter(jax.random.split(key, 32))

    def w(shape, scale=0.02):
        return scale * jax.random.normal(next(keys), shape, jnp.float32)

    L, H, I = LAYERS, HIDDEN, INTERMEDIATE
    zeros = lambda s: jnp.zeros(s, jnp.float32)
    ones = lambda s: jnp.ones(s, jnp.float32)

    return {
        "word_emb": w((VOCAB, H)),
        "pos_emb": w((MAX_POS, H)),
        "type_emb": w((1, H)),
        "emb_ln_g": ones((H,)),
        "emb_ln_b": zeros((H,)),
        "enc": {                                   # per-layer weights stacked on axis 0
            "qkv_w": w((L, H, 3 * H)),
            "qkv_b": zeros((L, 1, 3 * H)),
            "ao_w": w((L, H, H)),
            "ao_b": zeros((L, 1, H)),
            "attn_ln_g": ones((L, 1, H)),
            "attn_ln_b": zeros((L, 1, H)),
            "i_w": w((L, H, I)),
            "i_b": zeros((L, 1, I)),
            "o_w": w((L, I, H)),
            "o_b": zeros((L, 1, H)),
            "ffn_ln_g": ones((L, 1, H)),
            "ffn_ln_b": zeros((L, 1, H)),
        },
        "feat_w": w((FEATURE_DIM, H)),             # feature_dense
        "feat_b": zeros((H,)),
        "cls_w": w((2 * H, NUM_LABELS)),           # classifier
        "cls_b": zeros((NUM_LABELS,)),
    }


# ---------------------------------------------------------------- forward pass
def forward(params, input_ids, attention_mask, features, labels=None):
    B, S = input_ids.shape
    H = HIDDEN

    # --- roberta embeddings (gathers stay as XLA glue; LN is fused into the kernel) ---
    tok_mask = (input_ids != PAD_IDX).astype(jnp.int32)        # HF create_position_ids_from_input_ids
    pos_ids = jnp.cumsum(tok_mask, axis=1) * tok_mask + PAD_IDX
    emb = (
        jnp.take(params["word_emb"], input_ids, axis=0)
        + jnp.take(params["pos_emb"], pos_ids, axis=0)
        + params["type_emb"][0]
    ).reshape(B * S, H)

    mask_f = attention_mask.astype(jnp.float32)                # [B, S]

    # --- ONE fused pallas_call: embeddings-LN + all encoder layers + head ---
    logits = hybrid_model(emb, mask_f, params["emb_ln_g"], params["emb_ln_b"],
                          params["enc"], features.astype(jnp.float32),
                          params["feat_w"], params["feat_b"],
                          params["cls_w"], params["cls_b"], B=B, S=S)

    loss = None
    if labels is not None:
        # nn.CrossEntropyLoss(weight=[1.0, 1.5]), reduction='mean'
        class_weights = jnp.array([1.0, 1.5], jnp.float32)
        logp = jax.nn.log_softmax(logits, axis=-1)
        wts = class_weights[labels]
        nll = -jnp.take_along_axis(logp, labels[:, None], axis=1)[:, 0]
        loss = jnp.sum(wts * nll) / jnp.sum(wts)
    return loss, logits


# ---------------------------------------------------------------- demo / test
if __name__ == "__main__":
    key = jax.random.PRNGKey(0)
    pkey, ikey, fkey = jax.random.split(key, 3)

    params = init_params(pkey)

    B, S = 2, 8
    input_ids = jax.random.randint(ikey, (B, S), 0, VOCAB, dtype=jnp.int32)
    attention_mask = jnp.ones((B, S), jnp.int32).at[1, S - 2:].set(0)
    features = jax.random.normal(fkey, (B, FEATURE_DIM), jnp.float32)
    labels = jnp.array([0, 1], jnp.int32)

    fwd = jax.jit(forward)
    loss, logits = fwd(params, input_ids, attention_mask, features, labels)
    jax.block_until_ready((loss, logits))
    assert logits.shape == (B, NUM_LABELS)
    assert loss.shape == ()
    assert bool(jnp.isfinite(loss)) and bool(jnp.all(jnp.isfinite(logits)))
    print("KERNEL_OK")
</pallas_src>

<mosaic_0001>
module attributes {stable_mosaic.version = 11 : i64} {
  func.func @_model_kernel(%arg0: i32, %arg1: memref<16x32xf32, #tpu.memory_space<vmem>>, %arg2: memref<2x8xf32, #tpu.memory_space<vmem>>, %arg3: memref<1x32xf32, #tpu.memory_space<vmem>>, %arg4: memref<1x32xf32, #tpu.memory_space<vmem>>, %arg5: memref<1x32x96xf32, #tpu.memory_space<vmem>>, %arg6: memref<1x1x96xf32, #tpu.memory_space<vmem>>, %arg7: memref<1x32x32xf32, #tpu.memory_space<vmem>>, %arg8: memref<1x1x32xf32, #tpu.memory_space<vmem>>, %arg9: memref<1x1x32xf32, #tpu.memory_space<vmem>>, %arg10: memref<1x1x32xf32, #tpu.memory_space<vmem>>, %arg11: memref<1x32x64xf32, #tpu.memory_space<vmem>>, %arg12: memref<1x1x64xf32, #tpu.memory_space<vmem>>, %arg13: memref<1x64x32xf32, #tpu.memory_space<vmem>>, %arg14: memref<1x1x32xf32, #tpu.memory_space<vmem>>, %arg15: memref<1x1x32xf32, #tpu.memory_space<vmem>>, %arg16: memref<1x1x32xf32, #tpu.memory_space<vmem>>, %arg17: memref<2x16xf32, #tpu.memory_space<vmem>>, %arg18: memref<16x32xf32, #tpu.memory_space<vmem>>, %arg19: memref<1x32xf32, #tpu.memory_space<vmem>>, %arg20: memref<64x2xf32, #tpu.memory_space<vmem>>, %arg21: memref<1x2xf32, #tpu.memory_space<vmem>>, %arg22: memref<2x2xf32, #tpu.memory_space<vmem>>, %arg23: memref<16x32xf32, #tpu.memory_space<vmem>>) attributes {dimension_semantics = [#tpu.dimension_semantics<arbitrary>], iteration_bounds = array<i64: 2>, scalar_prefetch = 0 : i64, scratch_operands = 1 : i64, tpu.core_type = #tpu.core_type<tc>, window_params = [{pipeline_mode = #tpu.pipeline_mode<synchronous>, transform_indices = @transform_0, window_bounds = array<i64: 16, 32>}, {pipeline_mode = #tpu.pipeline_mode<synchronous>, transform_indices = @transform_1, window_bounds = array<i64: 2, 8>}, {pipeline_mode = #tpu.pipeline_mode<synchronous>, transform_indices = @transform_2, window_bounds = array<i64: 1, 32>}, {pipeline_mode = #tpu.pipeline_mode<synchronous>, transform_indices = @transform_3, window_bounds = array<i64: 1, 32>}, {transform_indices = @transform_4, window_bounds = array<i64: 1, 32, 96>}, {transform_indices = @transform_5, window_bounds = array<i64: 1, 1, 96>}, {transform_indices = @transform_6, window_bounds = array<i64: 1, 32, 32>}, {transform_indices = @transform_7, window_bounds = array<i64: 1, 1, 32>}, {transform_indices = @transform_8, window_bounds = array<i64: 1, 1, 32>}, {transform_indices = @transform_9, window_bounds = array<i64: 1, 1, 32>}, {transform_indices = @transform_10, window_bounds = array<i64: 1, 32, 64>}, {transform_indices = @transform_11, window_bounds = array<i64: 1, 1, 64>}, {transform_indices = @transform_12, window_bounds = array<i64: 1, 64, 32>}, {transform_indices = @transform_13, window_bounds = array<i64: 1, 1, 32>}, {transform_indices = @transform_14, window_bounds = array<i64: 1, 1, 32>}, {transform_indices = @transform_15, window_bounds = array<i64: 1, 1, 32>}, {pipeline_mode = #tpu.pipeline_mode<synchronous>, transform_indices = @transform_16, window_bounds = array<i64: 2, 16>}, {pipeline_mode = #tpu.pipeline_mode<synchronous>, transform_indices = @transform_17, window_bounds = array<i64: 16, 32>}, {pipeline_mode = #tpu.pipeline_mode<synchronous>, transform_indices = @transform_18, window_bounds = array<i64: 1, 32>}, {pipeline_mode = #tpu.pipeline_mode<synchronous>, transform_indices = @transform_19, window_bounds = array<i64: 64, 2>}, {pipeline_mode = #tpu.pipeline_mode<synchronous>, transform_indices = @transform_20, window_bounds = array<i64: 1, 2>}, {pipeline_mode = #tpu.pipeline_mode<synchronous>, transform_indices = @transform_21, window_bounds = array<i64: 2, 2>}]} {
    %c0_i32 = arith.constant 0 : i32
    %0 = arith.cmpi eq, %arg0, %c0_i32 : i32
    %1 = arith.extui %0 : i1 to i32
    %c0_i32_0 = arith.constant 0 : i32
    %2 = arith.cmpi ne, %1, %c0_i32_0 : i32
    scf.if %2 {
      %c0_113 = arith.constant 0 : index
      %c0_114 = arith.constant 0 : index
      %284 = vector.load %arg1[%c0_113, %c0_114] : memref<16x32xf32, #tpu.memory_space<vmem>>, vector<16x32xf32>
      %c0_115 = arith.constant 0 : index
      %c0_116 = arith.constant 0 : index
      %285 = vector.load %arg3[%c0_115, %c0_116] : memref<1x32xf32, #tpu.memory_space<vmem>>, vector<1x32xf32>
      %c0_117 = arith.constant 0 : index
      %c0_118 = arith.constant 0 : index
      %286 = vector.load %arg4[%c0_117, %c0_118] : memref<1x32xf32, #tpu.memory_space<vmem>>, vector<1x32xf32>
      %cst_119 = arith.constant dense<0.000000e+00> : vector<16xf32>
      %287 = vector.multi_reduction <add>, %284, %cst_119 [1] : vector<16x32xf32> to vector<16xf32>
      %288 = vector.shape_cast %287 : vector<16xf32> to vector<16x1xf32>
      %cst_120 = arith.constant 3.200000e+01 : f32
      %289 = vector.broadcast %cst_120 : f32 to vector<16x1xf32>
      %290 = arith.divf %288, %289 : vector<16x1xf32>
      %291 = vector.broadcast %290 : vector<16x1xf32> to vector<16x32xf32>
      %292 = arith.subf %284, %291 : vector<16x32xf32>
      %293 = arith.mulf %292, %292 : vector<16x32xf32>
      %cst_121 = arith.constant dense<0.000000e+00> : vector<16xf32>
      %294 = vector.multi_reduction <add>, %293, %cst_121 [1] : vector<16x32xf32> to vector<16xf32>
      %295 = vector.shape_cast %294 : vector<16xf32> to vector<16x1xf32>
      %cst_122 = arith.constant 3.200000e+01 : f32
      %296 = vector.broadcast %cst_122 : f32 to vector<16x1xf32>
      %297 = arith.divf %295, %296 : vector<16x1xf32>
      %298 = vector.broadcast %290 : vector<16x1xf32> to vector<16x32xf32>
      %299 = arith.subf %284, %298 : vector<16x32xf32>
      %cst_123 = arith.constant 9.99999974E-6 : f32
      %300 = vector.broadcast %cst_123 : f32 to vector<16x1xf32>
      %301 = arith.addf %297, %300 : vector<16x1xf32>
      %302 = math.rsqrt %301 : vector<16x1xf32>
      %303 = vector.broadcast %302 : vector<16x1xf32> to vector<16x32xf32>
      %304 = arith.mulf %299, %303 : vector<16x32xf32>
      %305 = vector.broadcast %285 : vector<1x32xf32> to vector<16x32xf32>
      %306 = arith.mulf %304, %305 : vector<16x32xf32>
      %307 = vector.broadcast %286 : vector<1x32xf32> to vector<16x32xf32>
      %308 = arith.addf %306, %307 : vector<16x32xf32>
      %c0_124 = arith.constant 0 : index
      %c0_125 = arith.constant 0 : index
      %309 = vector.load %arg23[%c0_124, %c0_125] : memref<16x32xf32, #tpu.memory_space<vmem>>, vector<16x32xf32>
      tpu.vector_store %arg23[%c0_124, %c0_125], %308 {strides = array<i32>} : memref<16x32xf32, #tpu.memory_space<vmem>>, vector<16x32xf32>,
    } else {
    }
    %c0 = arith.constant 0 : index
    %c0_1 = arith.constant 0 : index
    %3 = vector.load %arg23[%c0, %c0_1] : memref<16x32xf32, #tpu.memory_space<vmem>>, vector<16x32xf32>
    %c0_2 = arith.constant 0 : index
    %c0_3 = arith.constant 0 : index
    %c0_4 = arith.constant 0 : index
    %4 = vector.load %arg5[%c0_2, %c0_3, %c0_4] : memref<1x32x96xf32, #tpu.memory_space<vmem>>, vector<1x32x96xf32>
    %5 = vector.shape_cast %4 : vector<1x32x96xf32> to vector<32x96xf32>
    %cst = arith.constant dense<0.000000e+00> : vector<16x96xf32>
    %6 = tpu.matmul %3, %5, %cst {dimension_numbers = #tpu.dot_dimension_numbers<[1], [0], [0], [1], [0, 0, 1, 1], [], []>} : vector<16x32xf32>, vector<32x96xf32>, vector<16x96xf32> -> vector<16x96xf32>
    %c0_5 = arith.constant 0 : index
    %c0_6 = arith.constant 0 : index
    %c0_7 = arith.constant 0 : index
    %7 = vector.load %arg6[%c0_5, %c0_6, %c0_7] : memref<1x1x96xf32, #tpu.memory_space<vmem>>, vector<1x1x96xf32>
    %8 = vector.shape_cast %7 : vector<1x1x96xf32> to vector<1x96xf32>
    %9 = vector.broadcast %8 : vector<1x96xf32> to vector<16x96xf32>
    %10 = arith.addf %6, %9 : vector<16x96xf32>
    %c0_8 = arith.constant 0 : index
    %c0_9 = arith.constant 0 : index
    %11 = vector.load %arg2[%c0_8, %c0_9] : memref<2x8xf32, #tpu.memory_space<vmem>>, vector<2x8xf32>
    %cst_10 = arith.constant 1.000000e+00 : f32
    %12 = vector.broadcast %cst_10 : f32 to vector<2x8xf32>
    %13 = arith.subf %12, %11 : vector<2x8xf32>
    %cst_11 = arith.constant -1.000000e+09 : f32
    %14 = vector.broadcast %cst_11 : f32 to vector<2x8xf32>
    %15 = arith.mulf %13, %14 : vector<2x8xf32>
    %16 = vector.extract_strided_slice %15 {offsets = [0, 0], sizes = [1, 8], strides = [1, 1]} : vector<2x8xf32> to vector<1x8xf32>
    %17 = vector.extract_strided_slice %10 {offsets = [0, 0], sizes = [8, 8], strides = [1, 1]} : vector<16x96xf32> to vector<8x8xf32>
    %18 = vector.extract_strided_slice %10 {offsets = [0, 32], sizes = [8, 8], strides = [1, 1]} : vector<16x96xf32> to vector<8x8xf32>
    %19 = vector.extract_strided_slice %10 {offsets = [0, 64], sizes = [8, 8], strides = [1, 1]} : vector<16x96xf32> to vector<8x8xf32>
    "tpu.trace_start"() <{level = 10 : i32, message = "qd,kd->qk"}> : () -> ()
    %cst_12 = arith.constant dense<0.000000e+00> : vector<8x8xf32>
    %20 = tpu.matmul %17, %18, %cst_12 {dimension_numbers = #tpu.dot_dimension_numbers<[1], [1], [0], [0], [0, 0, 1, 0], [], []>} : vector<8x8xf32>, vector<8x8xf32>, vector<8x8xf32> -> vector<8x8xf32>
    "tpu.trace_stop"() : () -> ()
    %cst_13 = arith.constant 0.353553385 : f32
    %21 = vector.broadcast %cst_13 : f32 to vector<8x8xf32>
    %22 = arith.mulf %20, %21 : vector<8x8xf32>
    %23 = vector.broadcast %16 : vector<1x8xf32> to vector<8x8xf32>
    %24 = arith.addf %22, %23 : vector<8x8xf32>
    %cst_14 = arith.constant dense<0xFF800000> : vector<8xf32>
    %25 = vector.multi_reduction <maximumf>, %24, %cst_14 [1] : vector<8x8xf32> to vector<8xf32>
    %26 = vector.shape_cast %25 : vector<8xf32> to vector<8x1xf32>
    %27 = vector.broadcast %26 : vector<8x1xf32> to vector<8x8xf32>
    %28 = arith.subf %24, %27 : vector<8x8xf32>
    %29 = math.exp %28 : vector<8x8xf32>
    %cst_15 = arith.constant dense<0.000000e+00> : vector<8xf32>
    %30 = vector.multi_reduction <add>, %29, %cst_15 [1] : vector<8x8xf32> to vector<8xf32>
    %31 = vector.shape_cast %30 : vector<8xf32> to vector<8x1xf32>
    %32 = vector.broadcast %31 : vector<8x1xf32> to vector<8x8xf32>
    %33 = arith.divf %29, %32 : vector<8x8xf32>
    %cst_16 = arith.constant dense<0.000000e+00> : vector<8x8xf32>
    %34 = tpu.matmul %33, %19, %cst_16 {dimension_numbers = #tpu.dot_dimension_numbers<[1], [0], [0], [1], [0, 0, 1, 1], [], []>} : vector<8x8xf32>, vector<8x8xf32>, vector<8x8xf32> -> vector<8x8xf32>
    %35 = vector.extract_strided_slice %10 {offsets = [0, 8], sizes = [8, 8], strides = [1, 1]} : vector<16x96xf32> to vector<8x8xf32>
    %36 = vector.extract_strided_slice %10 {offsets = [0, 40], sizes = [8, 8], strides = [1, 1]} : vector<16x96xf32> to vector<8x8xf32>
    %37 = vector.extract_strided_slice %10 {offsets = [0, 72], sizes = [8, 8], strides = [1, 1]} : vector<16x96xf32> to vector<8x8xf32>
    "tpu.trace_start"() <{level = 10 : i32, message = "qd,kd->qk"}> : () -> ()
    %cst_17 = arith.constant dense<0.000000e+00> : vector<8x8xf32>
    %38 = tpu.matmul %35, %36, %cst_17 {dimension_numbers = #tpu.dot_dimension_numbers<[1], [1], [0], [0], [0, 0, 1, 0], [], []>} : vector<8x8xf32>, vector<8x8xf32>, vector<8x8xf32> -> vector<8x8xf32>
    "tpu.trace_stop"() : () -> ()
    %cst_18 = arith.constant 0.353553385 : f32
    %39 = vector.broadcast %cst_18 : f32 to vector<8x8xf32>
    %40 = arith.mulf %38, %39 : vector<8x8xf32>
    %41 = vector.broadcast %16 : vector<1x8xf32> to vector<8x8xf32>
    %42 = arith.addf %40, %41 : vector<8x8xf32>
    %cst_19 = arith.constant dense<0xFF800000> : vector<8xf32>
    %43 = vector.multi_reduction <maximumf>, %42, %cst_19 [1] : vector<8x8xf32> to vector<8xf32>
    %44 = vector.shape_cast %43 : vector<8xf32> to vector<8x1xf32>
    %45 = vector.broadcast %44 : vector<8x1xf32> to vector<8x8xf32>
    %46 = arith.subf %42, %45 : vector<8x8xf32>
    %47 = math.exp %46 : vector<8x8xf32>
    %cst_20 = arith.constant dense<0.000000e+00> : vector<8xf32>
    %48 = vector.multi_reduction <add>, %47, %cst_20 [1] : vector<8x8xf32> to vector<8xf32>
    %49 = vector.shape_cast %48 : vector<8xf32> to vector<8x1xf32>
    %50 = vector.broadcast %49 : vector<8x1xf32> to vector<8x8xf32>
    %51 = arith.divf %47, %50 : vector<8x8xf32>
    %cst_21 = arith.constant dense<0.000000e+00> : vector<8x8xf32>
    %52 = tpu.matmul %51, %37, %cst_21 {dimension_numbers = #tpu.dot_dimension_numbers<[1], [0], [0], [1], [0, 0, 1, 1], [], []>} : vector<8x8xf32>, vector<8x8xf32>, vector<8x8xf32> -> vector<8x8xf32>
    %53 = vector.extract_strided_slice %10 {offsets = [0, 16], sizes = [8, 8], strides = [1, 1]} : vector<16x96xf32> to vector<8x8xf32>
    %54 = vector.extract_strided_slice %10 {offsets = [0, 48], sizes = [8, 8], strides = [1, 1]} : vector<16x96xf32> to vector<8x8xf32>
    %55 = vector.extract_strided_slice %10 {offsets = [0, 80], sizes = [8, 8], strides = [1, 1]} : vector<16x96xf32> to vector<8x8xf32>
    "tpu.trace_start"() <{level = 10 : i32, message = "qd,kd->qk"}> : () -> ()
    %cst_22 = arith.constant dense<0.000000e+00> : vector<8x8xf32>
    %56 = tpu.matmul %53, %54, %cst_22 {dimension_numbers = #tpu.dot_dimension_numbers<[1], [1], [0], [0], [0, 0, 1, 0], [], []>} : vector<8x8xf32>, vector<8x8xf32>, vector<8x8xf32> -> vector<8x8xf32>
    "tpu.trace_stop"() : () -> ()
    %cst_23 = arith.constant 0.353553385 : f32
    %57 = vector.broadcast %cst_23 : f32 to vector<8x8xf32>
    %58 = arith.mulf %56, %57 : vector<8x8xf32>
    %59 = vector.broadcast %16 : vector<1x8xf32> to vector<8x8xf32>
    %60 = arith.addf %58, %59 : vector<8x8xf32>
    %cst_24 = arith.constant dense<0xFF800000> : vector<8xf32>
    %61 = vector.multi_reduction <maximumf>, %60, %cst_24 [1] : vector<8x8xf32> to vector<8xf32>
    %62 = vector.shape_cast %61 : vector<8xf32> to vector<8x1xf32>
    %63 = vector.broadcast %62 : vector<8x1xf32> to vector<8x8xf32>
    %64 = arith.subf %60, %63 : vector<8x8xf32>
    %65 = math.exp %64 : vector<8x8xf32>
    %cst_25 = arith.constant dense<0.000000e+00> : vector<8xf32>
    %66 = vector.multi_reduction <add>, %65, %cst_25 [1] : vector<8x8xf32> to vector<8xf32>
    %67 = vector.shape_cast %66 : vector<8xf32> to vector<8x1xf32>
    %68 = vector.broadcast %67 : vector<8x1xf32> to vector<8x8xf32>
    %69 = arith.divf %65, %68 : vector<8x8xf32>
    %cst_26 = arith.constant dense<0.000000e+00> : vector<8x8xf32>
    %70 = tpu.matmul %69, %55, %cst_26 {dimension_numbers = #tpu.dot_dimension_numbers<[1], [0], [0], [1], [0, 0, 1, 1], [], []>} : vector<8x8xf32>, vector<8x8xf32>, vector<8x8xf32> -> vector<8x8xf32>
    %71 = vector.extract_strided_slice %10 {offsets = [0, 24], sizes = [8, 8], strides = [1, 1]} : vector<16x96xf32> to vector<8x8xf32>
    %72 = vector.extract_strided_slice %10 {offsets = [0, 56], sizes = [8, 8], strides = [1, 1]} : vector<16x96xf32> to vector<8x8xf32>
    %73 = vector.extract_strided_slice %10 {offsets = [0, 88], sizes = [8, 8], strides = [1, 1]} : vector<16x96xf32> to vector<8x8xf32>
    "tpu.trace_start"() <{level = 10 : i32, message = "qd,kd->qk"}> : () -> ()
    %cst_27 = arith.constant dense<0.000000e+00> : vector<8x8xf32>
    %74 = tpu.matmul %71, %72, %cst_27 {dimension_numbers = #tpu.dot_dimension_numbers<[1], [1], [0], [0], [0, 0, 1, 0], [], []>} : vector<8x8xf32>, vector<8x8xf32>, vector<8x8xf32> -> vector<8x8xf32>
    "tpu.trace_stop"() : () -> ()
    %cst_28 = arith.constant 0.353553385 : f32
    %75 = vector.broadcast %cst_28 : f32 to vector<8x8xf32>
    %76 = arith.mulf %74, %75 : vector<8x8xf32>
    %77 = vector.broadcast %16 : vector<1x8xf32> to vector<8x8xf32>
    %78 = arith.addf %76, %77 : vector<8x8xf32>
    %cst_29 = arith.constant dense<0xFF800000> : vector<8xf32>
    %79 = vector.multi_reduction <maximumf>, %78, %cst_29 [1] : vector<8x8xf32> to vector<8xf32>
    %80 = vector.shape_cast %79 : vector<8xf32> to vector<8x1xf32>
    %81 = vector.broadcast %80 : vector<8x1xf32> to vector<8x8xf32>
    %82 = arith.subf %78, %81 : vector<8x8xf32>
    %83 = math.exp %82 : vector<8x8xf32>
    %cst_30 = arith.constant dense<0.000000e+00> : vector<8xf32>
    %84 = vector.multi_reduction <add>, %83, %cst_30 [1] : vector<8x8xf32> to vector<8xf32>
    %85 = vector.shape_cast %84 : vector<8xf32> to vector<8x1xf32>
    %86 = vector.broadcast %85 : vector<8x1xf32> to vector<8x8xf32>
    %87 = arith.divf %83, %86 : vector<8x8xf32>
    %cst_31 = arith.constant dense<0.000000e+00> : vector<8x8xf32>
    %88 = tpu.matmul %87, %73, %cst_31 {dimension_numbers = #tpu.dot_dimension_numbers<[1], [0], [0], [1], [0, 0, 1, 1], [], []>} : vector<8x8xf32>, vector<8x8xf32>, vector<8x8xf32> -> vector<8x8xf32>
    %89 = tpu.concatenate %34, %52, %70, %88 in 1 : vector<8x8xf32>, vector<8x8xf32>, vector<8x8xf32>, vector<8x8xf32> -> vector<8x32xf32>
    %90 = vector.extract_strided_slice %15 {offsets = [1, 0], sizes = [1, 8], strides = [1, 1]} : vector<2x8xf32> to vector<1x8xf32>
    %91 = vector.extract_strided_slice %10 {offsets = [8, 0], sizes = [8, 8], strides = [1, 1]} : vector<16x96xf32> to vector<8x8xf32>
    %92 = vector.extract_strided_slice %10 {offsets = [8, 32], sizes = [8, 8], strides = [1, 1]} : vector<16x96xf32> to vector<8x8xf32>
    %93 = vector.extract_strided_slice %10 {offsets = [8, 64], sizes = [8, 8], strides = [1, 1]} : vector<16x96xf32> to vector<8x8xf32>
    "tpu.trace_start"() <{level = 10 : i32, message = "qd,kd->qk"}> : () -> ()
    %cst_32 = arith.constant dense<0.000000e+00> : vector<8x8xf32>
    %94 = tpu.matmul %91, %92, %cst_32 {dimension_numbers = #tpu.dot_dimension_numbers<[1], [1], [0], [0], [0, 0, 1, 0], [], []>} : vector<8x8xf32>, vector<8x8xf32>, vector<8x8xf32> -> vector<8x8xf32>
    "tpu.trace_stop"() : () -> ()
    %cst_33 = arith.constant 0.353553385 : f32
    %95 = vector.broadcast %cst_33 : f32 to vector<8x8xf32>
    %96 = arith.mulf %94, %95 : vector<8x8xf32>
    %97 = vector.broadcast %90 : vector<1x8xf32> to vector<8x8xf32>
    %98 = arith.addf %96, %97 : vector<8x8xf32>
    %cst_34 = arith.constant dense<0xFF800000> : vector<8xf32>
    %99 = vector.multi_reduction <maximumf>, %98, %cst_34 [1] : vector<8x8xf32> to vector<8xf32>
    %100 = vector.shape_cast %99 : vector<8xf32> to vector<8x1xf32>
    %101 = vector.broadcast %100 : vector<8x1xf32> to vector<8x8xf32>
    %102 = arith.subf %98, %101 : vector<8x8xf32>
    %103 = math.exp %102 : vector<8x8xf32>
    %cst_35 = arith.constant dense<0.000000e+00> : vector<8xf32>
    %104 = vector.multi_reduction <add>, %103, %cst_35 [1] : vector<8x8xf32> to vector<8xf32>
    %105 = vector.shape_cast %104 : vector<8xf32> to vector<8x1xf32>
    %106 = vector.broadcast %105 : vector<8x1xf32> to vector<8x8xf32>
    %107 = arith.divf %103, %106 : vector<8x8xf32>
    %cst_36 = arith.constant dense<0.000000e+00> : vector<8x8xf32>
    %108 = tpu.matmul %107, %93, %cst_36 {dimension_numbers = #tpu.dot_dimension_numbers<[1], [0], [0], [1], [0, 0, 1, 1], [], []>} : vector<8x8xf32>, vector<8x8xf32>, vector<8x8xf32> -> vector<8x8xf32>
    %109 = vector.extract_strided_slice %10 {offsets = [8, 8], sizes = [8, 8], strides = [1, 1]} : vector<16x96xf32> to vector<8x8xf32>
    %110 = vector.extract_strided_slice %10 {offsets = [8, 40], sizes = [8, 8], strides = [1, 1]} : vector<16x96xf32> to vector<8x8xf32>
    %111 = vector.extract_strided_slice %10 {offsets = [8, 72], sizes = [8, 8], strides = [1, 1]} : vector<16x96xf32> to vector<8x8xf32>
    "tpu.trace_start"() <{level = 10 : i32, message = "qd,kd->qk"}> : () -> ()
    %cst_37 = arith.constant dense<0.000000e+00> : vector<8x8xf32>
    %112 = tpu.matmul %109, %110, %cst_37 {dimension_numbers = #tpu.dot_dimension_numbers<[1], [1], [0], [0], [0, 0, 1, 0], [], []>} : vector<8x8xf32>, vector<8x8xf32>, vector<8x8xf32> -> vector<8x8xf32>
    "tpu.trace_stop"() : () -> ()
    %cst_38 = arith.constant 0.353553385 : f32
    %113 = vector.broadcast %cst_38 : f32 to vector<8x8xf32>
    %114 = arith.mulf %112, %113 : vector<8x8xf32>
    %115 = vector.broadcast %90 : vector<1x8xf32> to vector<8x8xf32>
    %116 = arith.addf %114, %115 : vector<8x8xf32>
    %cst_39 = arith.constant dense<0xFF800000> : vector<8xf32>
    %117 = vector.multi_reduction <maximumf>, %116, %cst_39 [1] : vector<8x8xf32> to vector<8xf32>
    %118 = vector.shape_cast %117 : vector<8xf32> to vector<8x1xf32>
    %119 = vector.broadcast %118 : vector<8x1xf32> to vector<8x8xf32>
    %120 = arith.subf %116, %119 : vector<8x8xf32>
    %121 = math.exp %120 : vector<8x8xf32>
    %cst_40 = arith.constant dense<0.000000e+00> : vector<8xf32>
    %122 = vector.multi_reduction <add>, %121, %cst_40 [1] : vector<8x8xf32> to vector<8xf32>
    %123 = vector.shape_cast %122 : vector<8xf32> to vector<8x1xf32>
    %124 = vector.broadcast %123 : vector<8x1xf32> to vector<8x8xf32>
    %125 = arith.divf %121, %124 : vector<8x8xf32>
    %cst_41 = arith.constant dense<0.000000e+00> : vector<8x8xf32>
    %126 = tpu.matmul %125, %111, %cst_41 {dimension_numbers = #tpu.dot_dimension_numbers<[1], [0], [0], [1], [0, 0, 1, 1], [], []>} : vector<8x8xf32>, vector<8x8xf32>, vector<8x8xf32> -> vector<8x8xf32>
    %127 = vector.extract_strided_slice %10 {offsets = [8, 16], sizes = [8, 8], strides = [1, 1]} : vector<16x96xf32> to vector<8x8xf32>
    %128 = vector.extract_strided_slice %10 {offsets = [8, 48], sizes = [8, 8], strides = [1, 1]} : vector<16x96xf32> to vector<8x8xf32>
    %129 = vector.extract_strided_slice %10 {offsets = [8, 80], sizes = [8, 8], strides = [1, 1]} : vector<16x96xf32> to vector<8x8xf32>
    "tpu.trace_start"() <{level = 10 : i32, message = "qd,kd->qk"}> : () -> ()
    %cst_42 = arith.constant dense<0.000000e+00> : vector<8x8xf32>
    %130 = tpu.matmul %127, %128, %cst_42 {dimension_numbers = #tpu.dot_dimension_numbers<[1], [1], [0], [0], [0, 0, 1, 0], [], []>} : vector<8x8xf32>, vector<8x8xf32>, vector<8x8xf32> -> vector<8x8xf32>
    "tpu.trace_stop"() : () -> ()
    %cst_43 = arith.constant 0.353553385 : f32
    %131 = vector.broadcast %cst_43 : f32 to vector<8x8xf32>
    %132 = arith.mulf %130, %131 : vector<8x8xf32>
    %133 = vector.broadcast %90 : vector<1x8xf32> to vector<8x8xf32>
    %134 = arith.addf %132, %133 : vector<8x8xf32>
    %cst_44 = arith.constant dense<0xFF800000> : vector<8xf32>
    %135 = vector.multi_reduction <maximumf>, %134, %cst_44 [1] : vector<8x8xf32> to vector<8xf32>
    %136 = vector.shape_cast %135 : vector<8xf32> to vector<8x1xf32>
    %137 = vector.broadcast %136 : vector<8x1xf32> to vector<8x8xf32>
    %138 = arith.subf %134, %137 : vector<8x8xf32>
    %139 = math.exp %138 : vector<8x8xf32>
    %cst_45 = arith.constant dense<0.000000e+00> : vector<8xf32>
    %140 = vector.multi_reduction <add>, %139, %cst_45 [1] : vector<8x8xf32> to vector<8xf32>
    %141 = vector.shape_cast %140 : vector<8xf32> to vector<8x1xf32>
    %142 = vector.broadcast %141 : vector<8x1xf32> to vector<8x8xf32>
    %143 = arith.divf %139, %142 : vector<8x8xf32>
    %cst_46 = arith.constant dense<0.000000e+00> : vector<8x8xf32>
    %144 = tpu.matmul %143, %129, %cst_46 {dimension_numbers = #tpu.dot_dimension_numbers<[1], [0], [0], [1], [0, 0, 1, 1], [], []>} : vector<8x8xf32>, vector<8x8xf32>, vector<8x8xf32> -> vector<8x8xf32>
    %145 = vector.extract_strided_slice %10 {offsets = [8, 24], sizes = [8, 8], strides = [1, 1]} : vector<16x96xf32> to vector<8x8xf32>
    %146 = vector.extract_strided_slice %10 {offsets = [8, 56], sizes = [8, 8], strides = [1, 1]} : vector<16x96xf32> to vector<8x8xf32>
    %147 = vector.extract_strided_slice %10 {offsets = [8, 88], sizes = [8, 8], strides = [1, 1]} : vector<16x96xf32> to vector<8x8xf32>
    "tpu.trace_start"() <{level = 10 : i32, message = "qd,kd->qk"}> : () -> ()
    %cst_47 = arith.constant dense<0.000000e+00> : vector<8x8xf32>
    %148 = tpu.matmul %145, %146, %cst_47 {dimension_numbers = #tpu.dot_dimension_numbers<[1], [1], [0], [0], [0, 0, 1, 0], [], []>} : vector<8x8xf32>, vector<8x8xf32>, vector<8x8xf32> -> vector<8x8xf32>
    "tpu.trace_stop"() : () -> ()
    %cst_48 = arith.constant 0.353553385 : f32
    %149 = vector.broadcast %cst_48 : f32 to vector<8x8xf32>
    %150 = arith.mulf %148, %149 : vector<8x8xf32>
    %151 = vector.broadcast %90 : vector<1x8xf32> to vector<8x8xf32>
    %152 = arith.addf %150, %151 : vector<8x8xf32>
    %cst_49 = arith.constant dense<0xFF800000> : vector<8xf32>
    %153 = vector.multi_reduction <maximumf>, %152, %cst_49 [1] : vector<8x8xf32> to vector<8xf32>
    %154 = vector.shape_cast %153 : vector<8xf32> to vector<8x1xf32>
    %155 = vector.broadcast %154 : vector<8x1xf32> to vector<8x8xf32>
    %156 = arith.subf %152, %155 : vector<8x8xf32>
    %157 = math.exp %156 : vector<8x8xf32>
    %cst_50 = arith.constant dense<0.000000e+00> : vector<8xf32>
    %158 = vector.multi_reduction <add>, %157, %cst_50 [1] : vector<8x8xf32> to vector<8xf32>
    %159 = vector.shape_cast %158 : vector<8xf32> to vector<8x1xf32>
    %160 = vector.broadcast %159 : vector<8x1xf32> to vector<8x8xf32>
    %161 = arith.divf %157, %160 : vector<8x8xf32>
    %cst_51 = arith.constant dense<0.000000e+00> : vector<8x8xf32>
    %162 = tpu.matmul %161, %147, %cst_51 {dimension_numbers = #tpu.dot_dimension_numbers<[1], [0], [0], [1], [0, 0, 1, 1], [], []>} : vector<8x8xf32>, vector<8x8xf32>, vector<8x8xf32> -> vector<8x8xf32>
    %163 = tpu.concatenate %108, %126, %144, %162 in 1 : vector<8x8xf32>, vector<8x8xf32>, vector<8x8xf32>, vector<8x8xf32> -> vector<8x32xf32>
    %164 = tpu.concatenate %89, %163 in 0 : vector<8x32xf32>, vector<8x32xf32> -> vector<16x32xf32>
    %c0_52 = arith.constant 0 : index
    %c0_53 = arith.constant 0 : index
    %c0_54 = arith.constant 0 : index
    %165 = vector.load %arg7[%c0_52, %c0_53, %c0_54] : memref<1x32x32xf32, #tpu.memory_space<vmem>>, vector<1x32x32xf32>
    %166 = vector.shape_cast %165 : vector<1x32x32xf32> to vector<32x32xf32>
    %cst_55 = arith.constant dense<0.000000e+00> : vector<16x32xf32>
    %167 = tpu.matmul %164, %166, %cst_55 {dimension_numbers = #tpu.dot_dimension_numbers<[1], [0], [0], [1], [0, 0, 1, 1], [], []>} : vector<16x32xf32>, vector<32x32xf32>, vector<16x32xf32> -> vector<16x32xf32>
    %c0_56 = arith.constant 0 : index
    %c0_57 = arith.constant 0 : index
    %c0_58 = arith.constant 0 : index
    %168 = vector.load %arg8[%c0_56, %c0_57, %c0_58] : memref<1x1x32xf32, #tpu.memory_space<vmem>>, vector<1x1x32xf32>
    %169 = vector.shape_cast %168 : vector<1x1x32xf32> to vector<1x32xf32>
    %170 = vector.broadcast %169 : vector<1x32xf32> to vector<16x32xf32>
    %171 = arith.addf %167, %170 : vector<16x32xf32>
    %172 = arith.addf %171, %3 : vector<16x32xf32>
    %c0_59 = arith.constant 0 : index
    %c0_60 = arith.constant 0 : index
    %c0_61 = arith.constant 0 : index
    %173 = vector.load %arg9[%c0_59, %c0_60, %c0_61] : memref<1x1x32xf32, #tpu.memory_space<vmem>>, vector<1x1x32xf32>
    %174 = vector.shape_cast %173 : vector<1x1x32xf32> to vector<1x32xf32>
    %c0_62 = arith.constant 0 : index
    %c0_63 = arith.constant 0 : index
    %c0_64 = arith.constant 0 : index
    %175 = vector.load %arg10[%c0_62, %c0_63, %c0_64] : memref<1x1x32xf32, #tpu.memory_space<vmem>>, vector<1x1x32xf32>
    %176 = vector.shape_cast %175 : vector<1x1x32xf32> to vector<1x32xf32>
    %cst_65 = arith.constant dense<0.000000e+00> : vector<16xf32>
    %177 = vector.multi_reduction <add>, %172, %cst_65 [1] : vector<16x32xf32> to vector<16xf32>
    %178 = vector.shape_cast %177 : vector<16xf32> to vector<16x1xf32>
    %cst_66 = arith.constant 3.200000e+01 : f32
    %179 = vector.broadcast %cst_66 : f32 to vector<16x1xf32>
    %180 = arith.divf %178, %179 : vector<16x1xf32>
    %181 = vector.broadcast %180 : vector<16x1xf32> to vector<16x32xf32>
    %182 = arith.subf %172, %181 : vector<16x32xf32>
    %183 = arith.mulf %182, %182 : vector<16x32xf32>
    %cst_67 = arith.constant dense<0.000000e+00> : vector<16xf32>
    %184 = vector.multi_reduction <add>, %183, %cst_67 [1] : vector<16x32xf32> to vector<16xf32>
    %185 = vector.shape_cast %184 : vector<16xf32> to vector<16x1xf32>
    %cst_68 = arith.constant 3.200000e+01 : f32
    %186 = vector.broadcast %cst_68 : f32 to vector<16x1xf32>
    %187 = arith.divf %185, %186 : vector<16x1xf32>
    %188 = vector.broadcast %180 : vector<16x1xf32> to vector<16x32xf32>
    %189 = arith.subf %172, %188 : vector<16x32xf32>
    %cst_69 = arith.constant 9.99999974E-6 : f32
    %190 = vector.broadcast %cst_69 : f32 to vector<16x1xf32>
    %191 = arith.addf %187, %190 : vector<16x1xf32>
    %192 = math.rsqrt %191 : vector<16x1xf32>
    %193 = vector.broadcast %192 : vector<16x1xf32> to vector<16x32xf32>
    %194 = arith.mulf %189, %193 : vector<16x32xf32>
    %195 = vector.broadcast %174 : vector<1x32xf32> to vector<16x32xf32>
    %196 = arith.mulf %194, %195 : vector<16x32xf32>
    %197 = vector.broadcast %176 : vector<1x32xf32> to vector<16x32xf32>
    %198 = arith.addf %196, %197 : vector<16x32xf32>
    %c0_70 = arith.constant 0 : index
    %c0_71 = arith.constant 0 : index
    %c0_72 = arith.constant 0 : index
    %199 = vector.load %arg11[%c0_70, %c0_71, %c0_72] : memref<1x32x64xf32, #tpu.memory_space<vmem>>, vector<1x32x64xf32>
    %200 = vector.shape_cast %199 : vector<1x32x64xf32> to vector<32x64xf32>
    %cst_73 = arith.constant dense<0.000000e+00> : vector<16x64xf32>
    %201 = tpu.matmul %198, %200, %cst_73 {dimension_numbers = #tpu.dot_dimension_numbers<[1], [0], [0], [1], [0, 0, 1, 1], [], []>} : vector<16x32xf32>, vector<32x64xf32>, vector<16x64xf32> -> vector<16x64xf32>
    %c0_74 = arith.constant 0 : index
    %c0_75 = arith.constant 0 : index
    %c0_76 = arith.constant 0 : index
    %202 = vector.load %arg12[%c0_74, %c0_75, %c0_76] : memref<1x1x64xf32, #tpu.memory_space<vmem>>, vector<1x1x64xf32>
    %203 = vector.shape_cast %202 : vector<1x1x64xf32> to vector<1x64xf32>
    %204 = vector.broadcast %203 : vector<1x64xf32> to vector<16x64xf32>
    %205 = arith.addf %201, %204 : vector<16x64xf32>
    %cst_77 = arith.constant 5.000000e-01 : f32
    %206 = vector.broadcast %cst_77 : f32 to vector<16x64xf32>
    %207 = arith.mulf %206, %205 : vector<16x64xf32>
    %cst_78 = arith.constant 0.707106769 : f32
    %208 = vector.broadcast %cst_78 : f32 to vector<16x64xf32>
    %209 = arith.mulf %205, %208 : vector<16x64xf32>
    %210 = math.absf %209 : vector<16x64xf32>
    %cst_79 = arith.constant 0.327591091 : f32
    %211 = vector.broadcast %cst_79 : f32 to vector<16x64xf32>
    %212 = arith.mulf %211, %210 : vector<16x64xf32>
    %cst_80 = arith.constant 1.000000e+00 : f32
    %213 = vector.broadcast %cst_80 : f32 to vector<16x64xf32>
    %214 = arith.addf %213, %212 : vector<16x64xf32>
    %cst_81 = arith.constant 1.000000e+00 : f32
    %215 = vector.broadcast %cst_81 : f32 to vector<16x64xf32>
    %216 = arith.divf %215, %214 : vector<16x64xf32>
    %cst_82 = arith.constant 1.06140542 : f32
    %217 = vector.broadcast %cst_82 : f32 to vector<16x64xf32>
    %218 = arith.mulf %217, %216 : vector<16x64xf32>
    %cst_83 = arith.constant -1.45315206 : f32
    %219 = vector.broadcast %cst_83 : f32 to vector<16x64xf32>
    %220 = arith.addf %218, %219 : vector<16x64xf32>
    %221 = arith.mulf %220, %216 : vector<16x64xf32>
    %cst_84 = arith.constant 1.42141378 : f32
    %222 = vector.broadcast %cst_84 : f32 to vector<16x64xf32>
    %223 = arith.addf %221, %222 : vector<16x64xf32>
    %224 = arith.mulf %223, %216 : vector<16x64xf32>
    %cst_85 = arith.constant -0.284496725 : f32
    %225 = vector.broadcast %cst_85 : f32 to vector<16x64xf32>
    %226 = arith.addf %224, %225 : vector<16x64xf32>
    %227 = arith.mulf %226, %216 : vector<16x64xf32>
    %cst_86 = arith.constant 0.254829586 : f32
    %228 = vector.broadcast %cst_86 : f32 to vector<16x64xf32>
    %229 = arith.addf %227, %228 : vector<16x64xf32>
    %230 = arith.mulf %229, %216 : vector<16x64xf32>
    %cst_87 = arith.constant 0.000000e+00 : f32
    %231 = vector.broadcast %cst_87 : f32 to vector<16x64xf32>
    %232 = arith.subf %231, %210 : vector<16x64xf32>
    %233 = arith.mulf %232, %210 : vector<16x64xf32>
    %234 = math.exp %233 : vector<16x64xf32>
    %235 = arith.mulf %230, %234 : vector<16x64xf32>
    %cst_88 = arith.constant 1.000000e+00 : f32
    %236 = vector.broadcast %cst_88 : f32 to vector<16x64xf32>
    %237 = arith.subf %236, %235 : vector<16x64xf32>
    %cst_89 = arith.constant 0.000000e+00 : f32
    %238 = vector.broadcast %cst_89 : f32 to vector<16x64xf32>
    %239 = arith.cmpf olt, %209, %238 : vector<16x64xf32>
    %cst_90 = arith.constant 0.000000e+00 : f32
    %240 = vector.broadcast %cst_90 : f32 to vector<16x64xf32>
    %241 = arith.subf %240, %237 : vector<16x64xf32>
    %242 = arith.select %239, %241, %237 : vector<16x64xi1>, vector<16x64xf32>
    %cst_91 = arith.constant 1.000000e+00 : f32
    %243 = vector.broadcast %cst_91 : f32 to vector<16x64xf32>
    %244 = arith.addf %243, %242 : vector<16x64xf32>
    %245 = arith.mulf %207, %244 : vector<16x64xf32>
    %c0_92 = arith.constant 0 : index
    %c0_93 = arith.constant 0 : index
    %c0_94 = arith.constant 0 : index
    %246 = vector.load %arg13[%c0_92, %c0_93, %c0_94] : memref<1x64x32xf32, #tpu.memory_space<vmem>>, vector<1x64x32xf32>
    %247 = vector.shape_cast %246 : vector<1x64x32xf32> to vector<64x32xf32>
    %cst_95 = arith.constant dense<0.000000e+00> : vector<16x32xf32>
    %248 = tpu.matmul %245, %247, %cst_95 {dimension_numbers = #tpu.dot_dimension_numbers<[1], [0], [0], [1], [0, 0, 1, 1], [], []>} : vector<16x64xf32>, vector<64x32xf32>, vector<16x32xf32> -> vector<16x32xf32>
    %c0_96 = arith.constant 0 : index
    %c0_97 = arith.constant 0 : index
    %c0_98 = arith.constant 0 : index
    %249 = vector.load %arg14[%c0_96, %c0_97, %c0_98] : memref<1x1x32xf32, #tpu.memory_space<vmem>>, vector<1x1x32xf32>
    %250 = vector.shape_cast %249 : vector<1x1x32xf32> to vector<1x32xf32>
    %251 = vector.broadcast %250 : vector<1x32xf32> to vector<16x32xf32>
    %252 = arith.addf %248, %251 : vector<16x32xf32>
    %253 = arith.addf %252, %198 : vector<16x32xf32>
    %c0_99 = arith.constant 0 : index
    %c0_100 = arith.constant 0 : index
    %c0_101 = arith.constant 0 : index
    %254 = vector.load %arg15[%c0_99, %c0_100, %c0_101] : memref<1x1x32xf32, #tpu.memory_space<vmem>>, vector<1x1x32xf32>
    %255 = vector.shape_cast %254 : vector<1x1x32xf32> to vector<1x32xf32>
    %c0_102 = arith.constant 0 : index
    %c0_103 = arith.constant 0 : index
    %c0_104 = arith.constant 0 : index
    %256 = vector.load %arg16[%c0_102, %c0_103, %c0_104] : memref<1x1x32xf32, #tpu.memory_space<vmem>>, vector<1x1x32xf32>
    %257 = vector.shape_cast %256 : vector<1x1x32xf32> to vector<1x32xf32>
    %cst_105 = arith.constant dense<0.000000e+00> : vector<16xf32>
    %258 = vector.multi_reduction <add>, %253, %cst_105 [1] : vector<16x32xf32> to vector<16xf32>
    %259 = vector.shape_cast %258 : vector<16xf32> to vector<16x1xf32>
    %cst_106 = arith.constant 3.200000e+01 : f32
    %260 = vector.broadcast %cst_106 : f32 to vector<16x1xf32>
    %261 = arith.divf %259, %260 : vector<16x1xf32>
    %262 = vector.broadcast %261 : vector<16x1xf32> to vector<16x32xf32>
    %263 = arith.subf %253, %262 : vector<16x32xf32>
    %264 = arith.mulf %263, %263 : vector<16x32xf32>
    %cst_107 = arith.constant dense<0.000000e+00> : vector<16xf32>
    %265 = vector.multi_reduction <add>, %264, %cst_107 [1] : vector<16x32xf32> to vector<16xf32>
    %266 = vector.shape_cast %265 : vector<16xf32> to vector<16x1xf32>
    %cst_108 = arith.constant 3.200000e+01 : f32
    %267 = vector.broadcast %cst_108 : f32 to vector<16x1xf32>
    %268 = arith.divf %266, %267 : vector<16x1xf32>
    %269 = vector.broadcast %261 : vector<16x1xf32> to vector<16x32xf32>
    %270 = arith.subf %253, %269 : vector<16x32xf32>
    %cst_109 = arith.constant 9.99999974E-6 : f32
    %271 = vector.broadcast %cst_109 : f32 to vector<16x1xf32>
    %272 = arith.addf %268, %271 : vector<16x1xf32>
    %273 = math.rsqrt %272 : vector<16x1xf32>
    %274 = vector.broadcast %273 : vector<16x1xf32> to vector<16x32xf32>
    %275 = arith.mulf %270, %274 : vector<16x32xf32>
    %276 = vector.broadcast %255 : vector<1x32xf32> to vector<16x32xf32>
    %277 = arith.mulf %275, %276 : vector<16x32xf32>
    %278 = vector.broadcast %257 : vector<1x32xf32> to vector<16x32xf32>
    %279 = arith.addf %277, %278 : vector<16x32xf32>
    %c0_110 = arith.constant 0 : index
    %c0_111 = arith.constant 0 : index
    %280 = vector.load %arg23[%c0_110, %c0_111] : memref<16x32xf32, #tpu.memory_space<vmem>>, vector<16x32xf32>
    tpu.vector_store %arg23[%c0_110, %c0_111], %279 {strides = array<i32>} : memref<16x32xf32, #tpu.memory_space<vmem>>, vector<16x32xf32>,
    %c1_i32 = arith.constant 1 : i32
    %281 = arith.cmpi eq, %arg0, %c1_i32 : i32
    %282 = arith.extui %281 : i1 to i32
    %c0_i32_112 = arith.constant 0 : i32
    %283 = arith.cmpi ne, %282, %c0_i32_112 : i32
    scf.if %283 {
      %284 = vector.extract_strided_slice %279 {offsets = [0, 0], sizes = [1, 32], strides = [1, 1]} : vector<16x32xf32> to vector<1x32xf32>
      %285 = vector.extract_strided_slice %279 {offsets = [8, 0], sizes = [1, 32], strides = [1, 1]} : vector<16x32xf32> to vector<1x32xf32>
      %286 = tpu.concatenate %284, %285 in 0 : vector<1x32xf32>, vector<1x32xf32> -> vector<2x32xf32>
      %c0_113 = arith.constant 0 : index
      %c0_114 = arith.constant 0 : index
      %287 = vector.load %arg17[%c0_113, %c0_114] : memref<2x16xf32, #tpu.memory_space<vmem>>, vector<2x16xf32>
      %c0_115 = arith.constant 0 : index
      %c0_116 = arith.constant 0 : index
      %288 = vector.load %arg18[%c0_115, %c0_116] : memref<16x32xf32, #tpu.memory_space<vmem>>, vector<16x32xf32>
      %cst_117 = arith.constant dense<0.000000e+00> : vector<2x32xf32>
      %289 = tpu.matmul %287, %288, %cst_117 {dimension_numbers = #tpu.dot_dimension_numbers<[1], [0], [0], [1], [0, 0, 1, 1], [], []>} : vector<2x16xf32>, vector<16x32xf32>, vector<2x32xf32> -> vector<2x32xf32>
      %c0_118 = arith.constant 0 : index
      %c0_119 = arith.constant 0 : index
      %290 = vector.load %arg19[%c0_118, %c0_119] : memref<1x32xf32, #tpu.memory_space<vmem>>, vector<1x32xf32>
      %291 = vector.broadcast %290 : vector<1x32xf32> to vector<2x32xf32>
      %292 = arith.addf %289, %291 : vector<2x32xf32>
      %c0_120 = arith.constant 0 : index
      %c0_121 = arith.constant 0 : index
      %293 = vector.load %arg20[%c0_120, %c0_121] : memref<64x2xf32, #tpu.memory_space<vmem>>, vector<32x2xf32>
      %c32 = arith.constant 32 : index
      %c0_122 = arith.constant 0 : index
      %294 = vector.load %arg20[%c32, %c0_122] : memref<64x2xf32, #tpu.memory_space<vmem>>, vector<32x2xf32>
      %cst_123 = arith.constant dense<0.000000e+00> : vector<2x2xf32>
      %295 = tpu.matmul %286, %293, %cst_123 {dimension_numbers = #tpu.dot_dimension_numbers<[1], [0], [0], [1], [0, 0, 1, 1], [], []>} : vector<2x32xf32>, vector<32x2xf32>, vector<2x2xf32> -> vector<2x2xf32>
      %cst_124 = arith.constant dense<0.000000e+00> : vector<2x2xf32>
      %296 = tpu.matmul %292, %294, %cst_124 {dimension_numbers = #tpu.dot_dimension_numbers<[1], [0], [0], [1], [0, 0, 1, 1], [], []>} : vector<2x32xf32>, vector<32x2xf32>, vector<2x2xf32> -> vector<2x2xf32>
      %297 = arith.addf %295, %296 : vector<2x2xf32>
      %c0_125 = arith.constant 0 : index
      %c0_126 = arith.constant 0 : index
      %298 = vector.load %arg21[%c0_125, %c0_126] : memref<1x2xf32, #tpu.memory_space<vmem>>, vector<1x2xf32>
      %299 = vector.broadcast %298 : vector<1x2xf32> to vector<2x2xf32>
      %300 = arith.addf %297, %299 : vector<2x2xf32>
      %c0_127 = arith.constant 0 : index
      %c0_128 = arith.constant 0 : index
      %301 = vector.load %arg22[%c0_127, %c0_128] : memref<2x2xf32, #tpu.memory_space<vmem>>, vector<2x2xf32>
      tpu.vector_store %arg22[%c0_127, %c0_128], %300 {strides = array<i32>} : memref<2x2xf32, #tpu.memory_space<vmem>>, vector<2x2xf32>,
    } else {
    }
    return
  }
  func.func @transform_0(%arg0: i32) -> (i32, i32) {
    %c0_i32 = arith.constant 0 : i32
    %c0_i32_0 = arith.constant 0 : i32
    %c0_i32_1 = arith.constant 0 : i32
    return %c0_i32, %c0_i32_0 : i32, i32
  }
  func.func @transform_1(%arg0: i32) -> (i32, i32) {
    %c0_i32 = arith.constant 0 : i32
    %c0_i32_0 = arith.constant 0 : i32
    %c0_i32_1 = arith.constant 0 : i32
    return %c0_i32, %c0_i32_0 : i32, i32
  }
  func.func @transform_2(%arg0: i32) -> (i32, i32) {
    %c0_i32 = arith.constant 0 : i32
    %c0_i32_0 = arith.constant 0 : i32
    %c0_i32_1 = arith.constant 0 : i32
    return %c0_i32, %c0_i32_0 : i32, i32
  }
  func.func @transform_3(%arg0: i32) -> (i32, i32) {
    %c0_i32 = arith.constant 0 : i32
    %c0_i32_0 = arith.constant 0 : i32
    %c0_i32_1 = arith.constant 0 : i32
    return %c0_i32, %c0_i32_0 : i32, i32
  }
  func.func @transform_4(%arg0: i32) -> (i32, i32, i32) {
    %c0_i32 = arith.constant 0 : i32
    %c0_i32_0 = arith.constant 0 : i32
    %c0_i32_1 = arith.constant 0 : i32
    return %arg0, %c0_i32, %c0_i32_0 : i32, i32, i32
  }
  func.func @transform_5(%arg0: i32) -> (i32, i32, i32) {
    %c0_i32 = arith.constant 0 : i32
    %c0_i32_0 = arith.constant 0 : i32
    %c0_i32_1 = arith.constant 0 : i32
    return %arg0, %c0_i32, %c0_i32_0 : i32, i32, i32
  }
  func.func @transform_6(%arg0: i32) -> (i32, i32, i32) {
    %c0_i32 = arith.constant 0 : i32
    %c0_i32_0 = arith.constant 0 : i32
    %c0_i32_1 = arith.constant 0 : i32
    return %arg0, %c0_i32, %c0_i32_0 : i32, i32, i32
  }
  func.func @transform_7(%arg0: i32) -> (i32, i32, i32) {
    %c0_i32 = arith.constant 0 : i32
    %c0_i32_0 = arith.constant 0 : i32
    %c0_i32_1 = arith.constant 0 : i32
    return %arg0, %c0_i32, %c0_i32_0 : i32, i32, i32
  }
  func.func @transform_8(%arg0: i32) -> (i32, i32, i32) {
    %c0_i32 = arith.constant 0 : i32
    %c0_i32_0 = arith.constant 0 : i32
    %c0_i32_1 = arith.constant 0 : i32
    return %arg0, %c0_i32, %c0_i32_0 : i32, i32, i32
  }
  func.func @transform_9(%arg0: i32) -> (i32, i32, i32) {
    %c0_i32 = arith.constant 0 : i32
    %c0_i32_0 = arith.constant 0 : i32
    %c0_i32_1 = arith.constant 0 : i32
    return %arg0, %c0_i32, %c0_i32_0 : i32, i32, i32
  }
  func.func @transform_10(%arg0: i32) -> (i32, i32, i32) {
    %c0_i32 = arith.constant 0 : i32
    %c0_i32_0 = arith.constant 0 : i32
    %c0_i32_1 = arith.constant 0 : i32
    return %arg0, %c0_i32, %c0_i32_0 : i32, i32, i32
  }
  func.func @transform_11(%arg0: i32) -> (i32, i32, i32) {
    %c0_i32 = arith.constant 0 : i32
    %c0_i32_0 = arith.constant 0 : i32
    %c0_i32_1 = arith.constant 0 : i32
    return %arg0, %c0_i32, %c0_i32_0 : i32, i32, i32
  }
  func.func @transform_12(%arg0: i32) -> (i32, i32, i32) {
    %c0_i32 = arith.constant 0 : i32
    %c0_i32_0 = arith.constant 0 : i32
    %c0_i32_1 = arith.constant 0 : i32
    return %arg0, %c0_i32, %c0_i32_0 : i32, i32, i32
  }
  func.func @transform_13(%arg0: i32) -> (i32, i32, i32) {
    %c0_i32 = arith.constant 0 : i32
    %c0_i32_0 = arith.constant 0 : i32
    %c0_i32_1 = arith.constant 0 : i32
    return %arg0, %c0_i32, %c0_i32_0 : i32, i32, i32
  }
  func.func @transform_14(%arg0: i32) -> (i32, i32, i32) {
    %c0_i32 = arith.constant 0 : i32
    %c0_i32_0 = arith.constant 0 : i32
    %c0_i32_1 = arith.constant 0 : i32
    return %arg0, %c0_i32, %c0_i32_0 : i32, i32, i32
  }
  func.func @transform_15(%arg0: i32) -> (i32, i32, i32) {
    %c0_i32 = arith.constant 0 : i32
    %c0_i32_0 = arith.constant 0 : i32
    %c0_i32_1 = arith.constant 0 : i32
    return %arg0, %c0_i32, %c0_i32_0 : i32, i32, i32
  }
  func.func @transform_16(%arg0: i32) -> (i32, i32) {
    %c0_i32 = arith.constant 0 : i32
    %c0_i32_0 = arith.constant 0 : i32
    %c0_i32_1 = arith.constant 0 : i32
    return %c0_i32, %c0_i32_0 : i32, i32
  }
  func.func @transform_17(%arg0: i32) -> (i32, i32) {
    %c0_i32 = arith.constant 0 : i32
    %c0_i32_0 = arith.constant 0 : i32
    %c0_i32_1 = arith.constant 0 : i32
    return %c0_i32, %c0_i32_0 : i32, i32
  }
  func.func @transform_18(%arg0: i32) -> (i32, i32) {
    %c0_i32 = arith.constant 0 : i32
    %c0_i32_0 = arith.constant 0 : i32
    %c0_i32_1 = arith.constant 0 : i32
    return %c0_i32, %c0_i32_0 : i32, i32
  }
  func.func @transform_19(%arg0: i32) -> (i32, i32) {
    %c0_i32 = arith.constant 0 : i32
    %c0_i32_0 = arith.constant 0 : i32
    %c0_i32_1 = arith.constant 0 : i32
    return %c0_i32, %c0_i32_0 : i32, i32
  }
  func.func @transform_20(%arg0: i32) -> (i32, i32) {
    %c0_i32 = arith.constant 0 : i32
    %c0_i32_0 = arith.constant 0 : i32
    %c0_i32_1 = arith.constant 0 : i32
    return %c0_i32, %c0_i32_0 : i32, i32
  }
  func.func @transform_21(%arg0: i32) -> (i32, i32) {
    %c0_i32 = arith.constant 0 : i32
    %c0_i32_0 = arith.constant 0 : i32
    %c0_i32_1 = arith.constant 0 : i32
    return %c0_i32, %c0_i32_0 : i32, i32
  }
}

</mosaic_0001>

<llo_original>
// kernel: forward.1
$region0: #{forward.1}
  #allocation0 [shape = 'u32[]', space=smem, size = 0x4, offset = 0x4, fixed_abs, tag = 'smem constant byte address 0x4 - core index']
  #allocation1 [shape = 'u32[72,128]{1,0:T(1,128)}', space=vmem, size = 0x9000, scoped, tag = 'internal scratch']
  #allocation2 [shape = 'f32[16,32]{1,0:T(8,128)}', space=vmem, size = 0x2000, scoped, tag = 'scratch operand']
  %s0 = inlined_call_operand.vmem [shape: f32[16,32], index: 0, kind: input, shape index: {}]
  %s1 = inlined_call_operand.vmem [shape: f32[2,8], index: 1, kind: input, shape index: {}]
  %s2 = inlined_call_operand.vmem [shape: f32[1,32], index: 2, kind: input, shape index: {}]
  %s3 = inlined_call_operand.vmem [shape: f32[1,32], index: 3, kind: input, shape index: {}]
  %s4 = inlined_call_operand.vmem [shape: f32[2,32,96], index: 4, kind: input, shape index: {}]
  %s5 = inlined_call_operand.vmem [shape: f32[2,1,96], index: 5, kind: input, shape index: {}]
  %s6 = inlined_call_operand.vmem [shape: f32[2,32,32], index: 6, kind: input, shape index: {}]
  %s7 = inlined_call_operand.vmem [shape: f32[2,1,32], index: 7, kind: input, shape index: {}]
  %s8 = inlined_call_operand.vmem [shape: f32[2,1,32], index: 8, kind: input, shape index: {}]
  %s9 = inlined_call_operand.vmem [shape: f32[2,1,32], index: 9, kind: input, shape index: {}]
  %s10 = inlined_call_operand.vmem [shape: f32[2,32,64], index: 10, kind: input, shape index: {}]
  %s11 = inlined_call_operand.vmem [shape: f32[2,1,64], index: 11, kind: input, shape index: {}]
  %s12 = inlined_call_operand.vmem [shape: f32[2,64,32], index: 12, kind: input, shape index: {}]
  %s13 = inlined_call_operand.vmem [shape: f32[2,1,32], index: 13, kind: input, shape index: {}]
  %s14 = inlined_call_operand.vmem [shape: f32[2,1,32], index: 14, kind: input, shape index: {}]
  %s15 = inlined_call_operand.vmem [shape: f32[2,1,32], index: 15, kind: input, shape index: {}]
  %s16 = inlined_call_operand.vmem [shape: f32[2,16], index: 16, kind: input, shape index: {}]
  %s17 = inlined_call_operand.vmem [shape: f32[16,32], index: 17, kind: input, shape index: {}]
  %s18 = inlined_call_operand.vmem [shape: f32[1,32], index: 18, kind: input, shape index: {}]
  %s19 = inlined_call_operand.vmem [shape: f32[64,2], index: 19, kind: input, shape index: {}]
  %s20 = inlined_call_operand.vmem [shape: f32[1,2], index: 20, kind: input, shape index: {}]
  %s21 = inlined_call_operand.vmem [shape: f32[2,2], index: 21, kind: output, shape index: {}]
  %s22 = sld [smem:[#allocation0]]
  $region125: #{forward.1} parent=0
    _
  %s24 = ssub.s32 1, %s22
  %s25 = scalar_select 0, %s24, %s22
  loop: start=0, step=1, limit=4
  $region2: #{forward.1} parent=0 // loop_pre_header
    _
  $region3: #{forward.1} parent=0 // loop_header
    %s27 = sphi 0, %s31
    %p28 = scmp.ge.s32.totalorder %s27, 4
    %s35 = sphi 0, %s35
    %s37 = sphi 0, %s35
    %s38 = sphi 0, %s37
    %s52 = sphi 0, %s38
    %s56 = sphi 0, %s56
    %s58 = sphi 0, %s56
    %s59 = sphi 0, %s58
    %s73 = sphi 0, %s59
    %s77 = sphi 0, %s77
    %s79 = sphi 0, %s77
    %s80 = sphi 0, %s79
    %s94 = sphi 0, %s80
    %s98 = sphi 0, %s98
    %s100 = sphi 0, %s98
    %s101 = sphi 0, %s100
    %s115 = sphi 0, %s101
    %s121 = sphi 0, %s123
    %s124 = sphi 0, %s121
    %s125 = sphi 0, %s124
    %s141 = sphi 0, %s125
    %s147 = sphi 0, %s149
    %s150 = sphi 0, %s147
    %s151 = sphi 0, %s150
    %s167 = sphi 0, %s151
    %s173 = sphi 0, %s175
    %s176 = sphi 0, %s173
    %s177 = sphi 0, %s176
    %s193 = sphi 0, %s177
    %s199 = sphi 0, %s201
    %s202 = sphi 0, %s199
    %s203 = sphi 0, %s202
    %s219 = sphi 0, %s203
    %s225 = sphi 0, %s227
    %s228 = sphi 0, %s225
    %s229 = sphi 0, %s228
    %s245 = sphi 0, %s229
    %s251 = sphi 0, %s253
    %s254 = sphi 0, %s251
    %s255 = sphi 0, %s254
    %s271 = sphi 0, %s255
    %s277 = sphi 0, %s279
    %s280 = sphi 0, %s277
    %s281 = sphi 0, %s280
    %s297 = sphi 0, %s281
    %s303 = sphi 0, %s305
    %s306 = sphi 0, %s303
    %s307 = sphi 0, %s306
    %s323 = sphi 0, %s307
    %s329 = sphi 0, %s331
    %s332 = sphi 0, %s329
    %s333 = sphi 0, %s332
    %s349 = sphi 0, %s333
    %s355 = sphi 0, %s357
    %s358 = sphi 0, %s355
    %s359 = sphi 0, %s358
    %s375 = sphi 0, %s359
    %s381 = sphi 0, %s383
    %s384 = sphi 0, %s381
    %s385 = sphi 0, %s384
    %s401 = sphi 0, %s385
    %s407 = sphi 0, %s409
    %s410 = sphi 0, %s407
    %s411 = sphi 0, %s410
    %s427 = sphi 0, %s411
    %s431 = sphi 0, %s431
    %s433 = sphi 0, %s431
    %s434 = sphi 0, %s433
    %s448 = sphi 0, %s434
    %s452 = sphi 0, %s452
    %s454 = sphi 0, %s452
    %s455 = sphi 0, %s454
    %s469 = sphi 0, %s455
    %s473 = sphi 0, %s473
    %s475 = sphi 0, %s473
    %s476 = sphi 0, %s475
    %s490 = sphi 0, %s476
    %s494 = sphi 0, %s494
    %s496 = sphi 0, %s494
    %s497 = sphi 0, %s496
    %s511 = sphi 0, %s497
    %s515 = sphi 0, %s515
    %s517 = sphi 0, %s515
    %s518 = sphi 0, %s517
    %s532 = sphi 0, %s518
    %s536 = sphi 0, %s536
    %s538 = sphi 0, %s536
    %s539 = sphi 0, %s538
    %s553 = sphi 0, %s539
  $region4: #{forward.1} parent=0 // loop_header_branch
    %30 = sbr.rel (%p28) target = $region8
  $region5: #{forward.1} parent=0 // loop_body
    %s32 = ssub.s32 %s27, 1
    %s33 = ssub.s32 %s27, 2
    %s34 = sadd.s32 %s27, 1
    %s36 = sadd.s32 %s35, 1
    %p39 = scmp.eq.s32.totalorder %s27, 1
    %p40 = scmp.ne.s32.totalorder %s35, %s37
    %p41 = scmp.eq.s32.totalorder %s27, 0
    %p42 = por %p40, %p41
    %p43 = scmp.ne.s32.totalorder %s35, %s37
    %p44 = scmp.eq.s32.totalorder %s32, 1
    %p45 = por %p43, %p44
    %p46 = scmp.ne.s32.totalorder %s37, %s38
    %p47 = scmp.eq.s32.totalorder %s32, 0
    %p48 = por %p46, %p47
    %p49 = scmp.ne.s32.totalorder %s37, %s38
    %p50 = scmp.eq.s32.totalorder %s33, 1
    %p51 = por %p49, %p50
    %p53 = scmp.ne.s32.totalorder %s38, %s52
    %p54 = scmp.eq.s32.totalorder %s33, 0
    %p55 = por %p53, %p54
    %s57 = sadd.s32 %s56, 1
    %p60 = scmp.eq.s32.totalorder %s27, 1
    %p61 = scmp.ne.s32.totalorder %s56, %s58
    %p62 = scmp.eq.s32.totalorder %s27, 0
    %p63 = por %p61, %p62
    %p64 = scmp.ne.s32.totalorder %s56, %s58
    %p65 = scmp.eq.s32.totalorder %s32, 1
    %p66 = por %p64, %p65
    %p67 = scmp.ne.s32.totalorder %s58, %s59
    %p68 = scmp.eq.s32.totalorder %s32, 0
    %p69 = por %p67, %p68
    %p70 = scmp.ne.s32.totalorder %s58, %s59
    %p71 = scmp.eq.s32.totalorder %s33, 1
    %p72 = por %p70, %p71
    %p74 = scmp.ne.s32.totalorder %s59, %s73
    %p75 = scmp.eq.s32.totalorder %s33, 0
    %p76 = por %p74, %p75
    %s78 = sadd.s32 %s77, 1
    %p81 = scmp.eq.s32.totalorder %s27, 1
    %p82 = scmp.ne.s32.totalorder %s77, %s79
    %p83 = scmp.eq.s32.totalorder %s27, 0
    %p84 = por %p82, %p83
    %p85 = scmp.ne.s32.totalorder %s77, %s79
    %p86 = scmp.eq.s32.totalorder %s32, 1
    %p87 = por %p85, %p86
    %p88 = scmp.ne.s32.totalorder %s79, %s80
    %p89 = scmp.eq.s32.totalorder %s32, 0
    %p90 = por %p88, %p89
    %p91 = scmp.ne.s32.totalorder %s79, %s80
    %p92 = scmp.eq.s32.totalorder %s33, 1
    %p93 = por %p91, %p92
    %p95 = scmp.ne.s32.totalorder %s80, %s94
    %p96 = scmp.eq.s32.totalorder %s33, 0
    %p97 = por %p95, %p96
    %s99 = sadd.s32 %s98, 1
    %p102 = scmp.eq.s32.totalorder %s27, 1
    %p103 = scmp.ne.s32.totalorder %s98, %s100
    %p104 = scmp.eq.s32.totalorder %s27, 0
    %p105 = por %p103, %p104
    %p106 = scmp.ne.s32.totalorder %s98, %s100
    %p107 = scmp.eq.s32.totalorder %s32, 1
    %p108 = por %p106, %p107
    %p109 = scmp.ne.s32.totalorder %s100, %s101
    %p110 = scmp.eq.s32.totalorder %s32, 0
    %p111 = por %p109, %p110
    %p112 = scmp.ne.s32.totalorder %s100, %s101
    %p113 = scmp.eq.s32.totalorder %s33, 1
    %p114 = por %p112, %p113
    %p116 = scmp.ne.s32.totalorder %s101, %s115
    %p117 = scmp.eq.s32.totalorder %s33, 0
    %p118 = por %p116, %p117
    %s119 = ssub.s32 %s27, %s34
    %p120 = scmp.eq.s32.totalorder %s119, 0
    %s122 = sadd.s32 %s121, 1
    %s123 = scalar_select %p120, %s121, %s122
    %p126 = pneg %p120
    %p127 = scmp.eq.s32.totalorder %s27, 1
    %p128 = por %p126, %p127
    %p129 = scmp.ne.s32.totalorder %s121, %s124
    %p130 = scmp.eq.s32.totalorder %s27, 0
    %p131 = por %p129, %p130
    %p132 = scmp.ne.s32.totalorder %s121, %s124
    %p133 = scmp.eq.s32.totalorder %s32, 1
    %p134 = por %p132, %p133
    %p135 = scmp.ne.s32.totalorder %s124, %s125
    %p136 = scmp.eq.s32.totalorder %s32, 0
    %p137 = por %p135, %p136
    %p138 = scmp.ne.s32.totalorder %s124, %s125
    %p139 = scmp.eq.s32.totalorder %s33, 1
    %p140 = por %p138, %p139
    %p142 = scmp.ne.s32.totalorder %s125, %s141
    %p143 = scmp.eq.s32.totalorder %s33, 0
    %p144 = por %p142, %p143
    %s145 = ssub.s32 %s27, %s34
    %p146 = scmp.eq.s32.totalorder %s145, 0
    %s148 = sadd.s32 %s147, 1
    %s149 = scalar_select %p146, %s147, %s148
    %p152 = pneg %p146
    %p153 = scmp.eq.s32.totalorder %s27, 1
    %p154 = por %p152, %p153
    %p155 = scmp.ne.s32.totalorder %s147, %s150
    %p156 = scmp.eq.s32.totalorder %s27, 0
    %p157 = por %p155, %p156
    %p158 = scmp.ne.s32.totalorder %s147, %s150
    %p159 = scmp.eq.s32.totalorder %s32, 1
    %p160 = por %p158, %p159
    %p161 = scmp.ne.s32.totalorder %s150, %s151
    %p162 = scmp.eq.s32.totalorder %s32, 0
    %p163 = por %p161, %p162
    %p164 = scmp.ne.s32.totalorder %s150, %s151
    %p165 = scmp.eq.s32.totalorder %s33, 1
    %p166 = por %p164, %p165
    %p168 = scmp.ne.s32.totalorder %s151, %s167
    %p169 = scmp.eq.s32.totalorder %s33, 0
    %p170 = por %p168, %p169
    %s171 = ssub.s32 %s27, %s34
    %p172 = scmp.eq.s32.totalorder %s171, 0
    %s174 = sadd.s32 %s173, 1
    %s175 = scalar_select %p172, %s173, %s174
    %p178 = pneg %p172
    %p179 = scmp.eq.s32.totalorder %s27, 1
    %p180 = por %p178, %p179
    %p181 = scmp.ne.s32.totalorder %s173, %s176
    %p182 = scmp.eq.s32.totalorder %s27, 0
    %p183 = por %p181, %p182
    %p184 = scmp.ne.s32.totalorder %s173, %s176
    %p185 = scmp.eq.s32.totalorder %s32, 1
    %p186 = por %p184, %p185
    %p187 = scmp.ne.s32.totalorder %s176, %s177
    %p188 = scmp.eq.s32.totalorder %s32, 0
    %p189 = por %p187, %p188
    %p190 = scmp.ne.s32.totalorder %s176, %s177
    %p191 = scmp.eq.s32.totalorder %s33, 1
    %p192 = por %p190, %p191
    %p194 = scmp.ne.s32.totalorder %s177, %s193
    %p195 = scmp.eq.s32.totalorder %s33, 0
    %p196 = por %p194, %p195
    %s197 = ssub.s32 %s27, %s34
    %p198 = scmp.eq.s32.totalorder %s197, 0
    %s200 = sadd.s32 %s199, 1
    %s201 = scalar_select %p198, %s199, %s200
    %p204 = pneg %p198
    %p205 = scmp.eq.s32.totalorder %s27, 1
    %p206 = por %p204, %p205
    %p207 = scmp.ne.s32.totalorder %s199, %s202
    %p208 = scmp.eq.s32.totalorder %s27, 0
    %p209 = por %p207, %p208
    %p210 = scmp.ne.s32.totalorder %s199, %s202
    %p211 = scmp.eq.s32.totalorder %s32, 1
    %p212 = por %p210, %p211
    %p213 = scmp.ne.s32.totalorder %s202, %s203
    %p214 = scmp.eq.s32.totalorder %s32, 0
    %p215 = por %p213, %p214
    %p216 = scmp.ne.s32.totalorder %s202, %s203
    %p217 = scmp.eq.s32.totalorder %s33, 1
    %p218 = por %p216, %p217
    %p220 = scmp.ne.s32.totalorder %s203, %s219
    %p221 = scmp.eq.s32.totalorder %s33, 0
    %p222 = por %p220, %p221
    %s223 = ssub.s32 %s27, %s34
    %p224 = scmp.eq.s32.totalorder %s223, 0
    %s226 = sadd.s32 %s225, 1
    %s227 = scalar_select %p224, %s225, %s226
    %p230 = pneg %p224
    %p231 = scmp.eq.s32.totalorder %s27, 1
    %p232 = por %p230, %p231
    %p233 = scmp.ne.s32.totalorder %s225, %s228
    %p234 = scmp.eq.s32.totalorder %s27, 0
    %p235 = por %p233, %p234
    %p236 = scmp.ne.s32.totalorder %s225, %s228
    %p237 = scmp.eq.s32.totalorder %s32, 1
    %p238 = por %p236, %p237
    %p239 = scmp.ne.s32.totalorder %s228, %s229
    %p240 = scmp.eq.s32.totalorder %s32, 0
    %p241 = por %p239, %p240
    %p242 = scmp.ne.s32.totalorder %s228, %s229
    %p243 = scmp.eq.s32.totalorder %s33, 1
    %p244 = por %p242, %p243
    %p246 = scmp.ne.s32.totalorder %s229, %s245
    %p247 = scmp.eq.s32.totalorder %s33, 0
    %p248 = por %p246, %p247
    %s249 = ssub.s32 %s27, %s34
    %p250 = scmp.eq.s32.totalorder %s249, 0
    %s252 = sadd.s32 %s251, 1
    %s253 = scalar_select %p250, %s251, %s252
    %p256 = pneg %p250
    %p257 = scmp.eq.s32.totalorder %s27, 1
    %p258 = por %p256, %p257
    %p259 = scmp.ne.s32.totalorder %s251, %s254
    %p260 = scmp.eq.s32.totalorder %s27, 0
    %p261 = por %p259, %p260
    %p262 = scmp.ne.s32.totalorder %s251, %s254
    %p263 = scmp.eq.s32.totalorder %s32, 1
    %p264 = por %p262, %p263
    %p265 = scmp.ne.s32.totalorder %s254, %s255
    %p266 = scmp.eq.s32.totalorder %s32, 0
    %p267 = por %p265, %p266
    %p268 = scmp.ne.s32.totalorder %s254, %s255
    %p269 = scmp.eq.s32.totalorder %s33, 1
    %p270 = por %p268, %p269
    %p272 = scmp.ne.s32.totalorder %s255, %s271
    %p273 = scmp.eq.s32.totalorder %s33, 0
    %p274 = por %p272, %p273
    %s275 = ssub.s32 %s27, %s34
    %p276 = scmp.eq.s32.totalorder %s275, 0
    %s278 = sadd.s32 %s277, 1
    %s279 = scalar_select %p276, %s277, %s278
    %p282 = pneg %p276
    %p283 = scmp.eq.s32.totalorder %s27, 1
    %p284 = por %p282, %p283
    %p285 = scmp.ne.s32.totalorder %s277, %s280
    %p286 = scmp.eq.s32.totalorder %s27, 0
    %p287 = por %p285, %p286
    %p288 = scmp.ne.s32.totalorder %s277, %s280
    %p289 = scmp.eq.s32.totalorder %s32, 1
    %p290 = por %p288, %p289
    %p291 = scmp.ne.s32.totalorder %s280, %s281
    %p292 = scmp.eq.s32.totalorder %s32, 0
    %p293 = por %p291, %p292
    %p294 = scmp.ne.s32.totalorder %s280, %s281
    %p295 = scmp.eq.s32.totalorder %s33, 1
    %p296 = por %p294, %p295
    %p298 = scmp.ne.s32.totalorder %s281, %s297
    %p299 = scmp.eq.s32.totalorder %s33, 0
    %p300 = por %p298, %p299
    %s301 = ssub.s32 %s27, %s34
    %p302 = scmp.eq.s32.totalorder %s301, 0
    %s304 = sadd.s32 %s303, 1
    %s305 = scalar_select %p302, %s303, %s304
    %p308 = pneg %p302
    %p309 = scmp.eq.s32.totalorder %s27, 1
    %p310 = por %p308, %p309
    %p311 = scmp.ne.s32.totalorder %s303, %s306
    %p312 = scmp.eq.s32.totalorder %s27, 0
    %p313 = por %p311, %p312
    %p314 = scmp.ne.s32.totalorder %s303, %s306
    %p315 = scmp.eq.s32.totalorder %s32, 1
    %p316 = por %p314, %p315
    %p317 = scmp.ne.s32.totalorder %s306, %s307
    %p318 = scmp.eq.s32.totalorder %s32, 0
    %p319 = por %p317, %p318
    %p320 = scmp.ne.s32.totalorder %s306, %s307
    %p321 = scmp.eq.s32.totalorder %s33, 1
    %p322 = por %p320, %p321
    %p324 = scmp.ne.s32.totalorder %s307, %s323
    %p325 = scmp.eq.s32.totalorder %s33, 0
    %p326 = por %p324, %p325
    %s327 = ssub.s32 %s27, %s34
    %p328 = scmp.eq.s32.totalorder %s327, 0
    %s330 = sadd.s32 %s329, 1
    %s331 = scalar_select %p328, %s329, %s330
    %p334 = pneg %p328
    %p335 = scmp.eq.s32.totalorder %s27, 1
    %p336 = por %p334, %p335
    %p337 = scmp.ne.s32.totalorder %s329, %s332
    %p338 = scmp.eq.s32.totalorder %s27, 0
    %p339 = por %p337, %p338
    %p340 = scmp.ne.s32.totalorder %s329, %s332
    %p341 = scmp.eq.s32.totalorder %s32, 1
    %p342 = por %p340, %p341
    %p343 = scmp.ne.s32.totalorder %s332, %s333
    %p344 = scmp.eq.s32.totalorder %s32, 0
    %p345 = por %p343, %p344
    %p346 = scmp.ne.s32.totalorder %s332, %s333
    %p347 = scmp.eq.s32.totalorder %s33, 1
    %p348 = por %p346, %p347
    %p350 = scmp.ne.s32.totalorder %s333, %s349
    %p351 = scmp.eq.s32.totalorder %s33, 0
    %p352 = por %p350, %p351
    %s353 = ssub.s32 %s27, %s34
    %p354 = scmp.eq.s32.totalorder %s353, 0
    %s356 = sadd.s32 %s355, 1
    %s357 = scalar_select %p354, %s355, %s356
    %p360 = pneg %p354
    %p361 = scmp.eq.s32.totalorder %s27, 1
    %p362 = por %p360, %p361
    %p363 = scmp.ne.s32.totalorder %s355, %s358
    %p364 = scmp.eq.s32.totalorder %s27, 0
    %p365 = por %p363, %p364
    %p366 = scmp.ne.s32.totalorder %s355, %s358
    %p367 = scmp.eq.s32.totalorder %s32, 1
    %p368 = por %p366, %p367
    %p369 = scmp.ne.s32.totalorder %s358, %s359
    %p370 = scmp.eq.s32.totalorder %s32, 0
    %p371 = por %p369, %p370
    %p372 = scmp.ne.s32.totalorder %s358, %s359
    %p373 = scmp.eq.s32.totalorder %s33, 1
    %p374 = por %p372, %p373
    %p376 = scmp.ne.s32.totalorder %s359, %s375
    %p377 = scmp.eq.s32.totalorder %s33, 0
    %p378 = por %p376, %p377
    %s379 = ssub.s32 %s27, %s34
    %p380 = scmp.eq.s32.totalorder %s379, 0
    %s382 = sadd.s32 %s381, 1
    %s383 = scalar_select %p380, %s381, %s382
    %p386 = pneg %p380
    %p387 = scmp.eq.s32.totalorder %s27, 1
    %p388 = por %p386, %p387
    %p389 = scmp.ne.s32.totalorder %s381, %s384
    %p390 = scmp.eq.s32.totalorder %s27, 0
    %p391 = por %p389, %p390
    %p392 = scmp.ne.s32.totalorder %s381, %s384
    %p393 = scmp.eq.s32.totalorder %s32, 1
    %p394 = por %p392, %p393
    %p395 = scmp.ne.s32.totalorder %s384, %s385
    %p396 = scmp.eq.s32.totalorder %s32, 0
    %p397 = por %p395, %p396
    %p398 = scmp.ne.s32.totalorder %s384, %s385
    %p399 = scmp.eq.s32.totalorder %s33, 1
    %p400 = por %p398, %p399
    %p402 = scmp.ne.s32.totalorder %s385, %s401
    %p403 = scmp.eq.s32.totalorder %s33, 0
    %p404 = por %p402, %p403
    %s405 = ssub.s32 %s27, %s34
    %p406 = scmp.eq.s32.totalorder %s405, 0
    %s408 = sadd.s32 %s407, 1
    %s409 = scalar_select %p406, %s407, %s408
    %p412 = pneg %p406
    %p413 = scmp.eq.s32.totalorder %s27, 1
    %p414 = por %p412, %p413
    %p415 = scmp.ne.s32.totalorder %s407, %s410
    %p416 = scmp.eq.s32.totalorder %s27, 0
    %p417 = por %p415, %p416
    %p418 = scmp.ne.s32.totalorder %s407, %s410
    %p419 = scmp.eq.s32.totalorder %s32, 1
    %p420 = por %p418, %p419
    %p421 = scmp.ne.s32.totalorder %s410, %s411
    %p422 = scmp.eq.s32.totalorder %s32, 0
    %p423 = por %p421, %p422
    %p424 = scmp.ne.s32.totalorder %s410, %s411
    %p425 = scmp.eq.s32.totalorder %s33, 1
    %p426 = por %p424, %p425
    %p428 = scmp.ne.s32.totalorder %s411, %s427
    %p429 = scmp.eq.s32.totalorder %s33, 0
    %p430 = por %p428, %p429
    %s432 = sadd.s32 %s431, 1
    %p435 = scmp.eq.s32.totalorder %s27, 1
    %p436 = scmp.ne.s32.totalorder %s431, %s433
    %p437 = scmp.eq.s32.totalorder %s27, 0
    %p438 = por %p436, %p437
    %p439 = scmp.ne.s32.totalorder %s431, %s433
    %p440 = scmp.eq.s32.totalorder %s32, 1
    %p441 = por %p439, %p440
    %p442 = scmp.ne.s32.totalorder %s433, %s434
    %p443 = scmp.eq.s32.totalorder %s32, 0
    %p444 = por %p442, %p443
    %p445 = scmp.ne.s32.totalorder %s433, %s434
    %p446 = scmp.eq.s32.totalorder %s33, 1
    %p447 = por %p445, %p446
    %p449 = scmp.ne.s32.totalorder %s434, %s448
    %p450 = scmp.eq.s32.totalorder %s33, 0
    %p451 = por %p449, %p450
    %s453 = sadd.s32 %s452, 1
    %p456 = scmp.eq.s32.totalorder %s27, 1
    %p457 = scmp.ne.s32.totalorder %s452, %s454
    %p458 = scmp.eq.s32.totalorder %s27, 0
    %p459 = por %p457, %p458
    %p460 = scmp.ne.s32.totalorder %s452, %s454
    %p461 = scmp.eq.s32.totalorder %s32, 1
    %p462 = por %p460, %p461
    %p463 = scmp.ne.s32.totalorder %s454, %s455
    %p464 = scmp.eq.s32.totalorder %s32, 0
    %p465 = por %p463, %p464
    %p466 = scmp.ne.s32.totalorder %s454, %s455
    %p467 = scmp.eq.s32.totalorder %s33, 1
    %p468 = por %p466, %p467
    %p470 = scmp.ne.s32.totalorder %s455, %s469
    %p471 = scmp.eq.s32.totalorder %s33, 0
    %p472 = por %p470, %p471
    %s474 = sadd.s32 %s473, 1
    %p477 = scmp.eq.s32.totalorder %s27, 1
    %p478 = scmp.ne.s32.totalorder %s473, %s475
    %p479 = scmp.eq.s32.totalorder %s27, 0
    %p480 = por %p478, %p479
    %p481 = scmp.ne.s32.totalorder %s473, %s475
    %p482 = scmp.eq.s32.totalorder %s32, 1
    %p483 = por %p481, %p482
    %p484 = scmp.ne.s32.totalorder %s475, %s476
    %p485 = scmp.eq.s32.totalorder %s32, 0
    %p486 = por %p484, %p485
    %p487 = scmp.ne.s32.totalorder %s475, %s476
    %p488 = scmp.eq.s32.totalorder %s33, 1
    %p489 = por %p487, %p488
    %p491 = scmp.ne.s32.totalorder %s476, %s490
    %p492 = scmp.eq.s32.totalorder %s33, 0
    %p493 = por %p491, %p492
    %s495 = sadd.s32 %s494, 1
    %p498 = scmp.eq.s32.totalorder %s27, 1
    %p499 = scmp.ne.s32.totalorder %s494, %s496
    %p500 = scmp.eq.s32.totalorder %s27, 0
    %p501 = por %p499, %p500
    %p502 = scmp.ne.s32.totalorder %s494, %s496
    %p503 = scmp.eq.s32.totalorder %s32, 1
    %p504 = por %p502, %p503
    %p505 = scmp.ne.s32.totalorder %s496, %s497
    %p506 = scmp.eq.s32.totalorder %s32, 0
    %p507 = por %p505, %p506
    %p508 = scmp.ne.s32.totalorder %s496, %s497
    %p509 = scmp.eq.s32.totalorder %s33, 1
    %p510 = por %p508, %p509
    %p512 = scmp.ne.s32.totalorder %s497, %s511
    %p513 = scmp.eq.s32.totalorder %s33, 0
    %p514 = por %p512, %p513
    %s516 = sadd.s32 %s515, 1
    %p519 = scmp.eq.s32.totalorder %s27, 1
    %p520 = scmp.ne.s32.totalorder %s515, %s517
    %p521 = scmp.eq.s32.totalorder %s27, 0
    %p522 = por %p520, %p521
    %p523 = scmp.ne.s32.totalorder %s515, %s517
    %p524 = scmp.eq.s32.totalorder %s32, 1
    %p525 = por %p523, %p524
    %p526 = scmp.ne.s32.totalorder %s517, %s518
    %p527 = scmp.eq.s32.totalorder %s32, 0
    %p528 = por %p526, %p527
    %p529 = scmp.ne.s32.totalorder %s517, %s518
    %p530 = scmp.eq.s32.totalorder %s33, 1
    %p531 = por %p529, %p530
    %p533 = scmp.ne.s32.totalorder %s518, %s532
    %p534 = scmp.eq.s32.totalorder %s33, 0
    %p535 = por %p533, %p534
    %s537 = sadd.s32 %s536, 1
    %p540 = scmp.eq.s32.totalorder %s27, 1
    %p541 = scmp.ne.s32.totalorder %s536, %s538
    %p542 = scmp.eq.s32.totalorder %s27, 0
    %p543 = por %p541, %p542
    %p544 = scmp.ne.s32.totalorder %s536, %s538
    %p545 = scmp.eq.s32.totalorder %s32, 1
    %p546 = por %p544, %p545
    %p547 = scmp.ne.s32.totalorder %s538, %s539
    %p548 = scmp.eq.s32.totalorder %s32, 0
    %p549 = por %p547, %p548
    %p550 = scmp.ne.s32.totalorder %s538, %s539
    %p551 = scmp.eq.s32.totalorder %s33, 1
    %p552 = por %p550, %p551
    %p554 = scmp.ne.s32.totalorder %s539, %s553
    %p555 = scmp.eq.s32.totalorder %s33, 0
    %p556 = por %p554, %p555
    %p557 = scmp.le.s32.totalorder 1, %s27
    %p558 = scmp.lt.s32.totalorder %s27, 3
    %p559 = pnand %p557, %p558
    %p560 = pneg %p559
    // Predicated region
    $region9: #{forward.1} parent=5 // pred_check
      _
    $region10: #{forward.1} parent=5 // pred_check_branch
      %562 = sbr.rel (%p559) target = $region12
    $region11: #{forward.1} parent=5 // pred_region
      %s563 = ssub.s32 %s27, 1
      // Predicated region
      $region13: #{forward.1} parent=11 // pred_check
        %p564 = pneg %p48
      $region14: #{forward.1} parent=11 // pred_check_branch
        %566 = sbr.rel (%p564) target = $region16
      $region15: #{forward.1} parent=11 // pred_region
        _
      $region16: #{forward.1} parent=11 // pred_fallthru
        _
      // Predicated region
      $region17: #{forward.1} parent=11 // pred_check
        %p567 = pneg %p69
      $region18: #{forward.1} parent=11 // pred_check_branch
        %569 = sbr.rel (%p567) target = $region20
      $region19: #{forward.1} parent=11 // pred_region
        _
      $region20: #{forward.1} parent=11 // pred_fallthru
        _
      // Predicated region
      $region21: #{forward.1} parent=11 // pred_check
        %p570 = pneg %p90
      $region22: #{forward.1} parent=11 // pred_check_branch
        %572 = sbr.rel (%p570) target = $region24
      $region23: #{forward.1} parent=11 // pred_region
        _
      $region24: #{forward.1} parent=11 // pred_fallthru
        _
      // Predicated region
      $region25: #{forward.1} parent=11 // pred_check
        %p573 = pneg %p111
      $region26: #{forward.1} parent=11 // pred_check_branch
        %575 = sbr.rel (%p573) target = $region28
      $region27: #{forward.1} parent=11 // pred_region
        _
      $region28: #{forward.1} parent=11 // pred_fallthru
        _
      // Predicated region
      $region29: #{forward.1} parent=11 // pred_check
        %p576 = pneg %p444
      $region30: #{forward.1} parent=11 // pred_check_branch
        %578 = sbr.rel (%p576) target = $region32
      $region31: #{forward.1} parent=11 // pred_region
        _
      $region32: #{forward.1} parent=11 // pred_fallthru
        _
      // Predicated region
      $region33: #{forward.1} parent=11 // pred_check
        %p579 = pneg %p465
      $region34: #{forward.1} parent=11 // pred_check_branch
        %581 = sbr.rel (%p579) target = $region36
      $region35: #{forward.1} parent=11 // pred_region
        _
      $region36: #{forward.1} parent=11 // pred_fallthru
        _
      // Predicated region
      $region37: #{forward.1} parent=11 // pred_check
        %p582 = pneg %p486
      $region38: #{forward.1} parent=11 // pred_check_branch
        %584 = sbr.rel (%p582) target = $region40
      $region39: #{forward.1} parent=11 // pred_region
        _
      $region40: #{forward.1} parent=11 // pred_fallthru
        _
      // Predicated region
      $region41: #{forward.1} parent=11 // pred_check
        %p585 = pneg %p507
      $region42: #{forward.1} parent=11 // pred_check_branch
        %587 = sbr.rel (%p585) target = $region44
      $region43: #{forward.1} parent=11 // pred_region
        _
      $region44: #{forward.1} parent=11 // pred_fallthru
        _
      // Predicated region
      $region45: #{forward.1} parent=11 // pred_check
        %p588 = pneg %p528
      $region46: #{forward.1} parent=11 // pred_check_branch
        %590 = sbr.rel (%p588) target = $region48
      $region47: #{forward.1} parent=11 // pred_region
        _
      $region48: #{forward.1} parent=11 // pred_fallthru
        _
    $region12: #{forward.1} parent=5 // pred_fallthru
      _
    %p591 = scmp.lt.s32.totalorder %s27, 2
    // Predicated region
    $region49: #{forward.1} parent=5 // pred_check
      %p592 = pneg %p591
    $region50: #{forward.1} parent=5 // pred_check_branch
      %594 = sbr.rel (%p592) target = $region52
    $region51: #{forward.1} parent=5 // pred_region
      // Predicated region
      $region53: #{forward.1} parent=51 // pred_check
        %p595 = pneg %p131
      $region54: #{forward.1} parent=51 // pred_check_branch
        %597 = sbr.rel (%p595) target = $region56
      $region55: #{forward.1} parent=51 // pred_region
        %p598 = scmp.lt.s32.totalorder %s27, 1
        %s599 = scalar_select %p598, %s27, 1
        %s600 = smul.addr %s599, 4
        %s601 = smul.addr %s600, 8
        %s602 = scalar_lea.vmem %s4, %s601
      $region56: #{forward.1} parent=51 // pred_fallthru
        _
      // Predicated region
      $region57: #{forward.1} parent=51 // pred_check
        %p603 = pneg %p157
      $region58: #{forward.1} parent=51 // pred_check_branch
        %605 = sbr.rel (%p603) target = $region60
      $region59: #{forward.1} parent=51 // pred_region
        %p606 = scmp.lt.s32.totalorder %s27, 1
        %s607 = scalar_select %p606, %s27, 1
        %s608 = scalar_lea.vmem %s5, %s607
      $region60: #{forward.1} parent=51 // pred_fallthru
        _
      // Predicated region
      $region61: #{forward.1} parent=51 // pred_check
        %p609 = pneg %p183
      $region62: #{forward.1} parent=51 // pred_check_branch
        %611 = sbr.rel (%p609) target = $region64
      $region63: #{forward.1} parent=51 // pred_region
        %p612 = scmp.lt.s32.totalorder %s27, 1
        %s613 = scalar_select %p612, %s27, 1
        %s614 = smul.addr %s613, 4
        %s615 = smul.addr %s614, 8
        %s616 = scalar_lea.vmem %s6, %s615
      $region64: #{forward.1} parent=51 // pred_fallthru
        _
      // Predicated region
      $region65: #{forward.1} parent=51 // pred_check
        %p617 = pneg %p209
      $region66: #{forward.1} parent=51 // pred_check_branch
        %619 = sbr.rel (%p617) target = $region68
      $region67: #{forward.1} parent=51 // pred_region
        %p620 = scmp.lt.s32.totalorder %s27, 1
        %s621 = scalar_select %p620, %s27, 1
        %s622 = scalar_lea.vmem %s7, %s621
      $region68: #{forward.1} parent=51 // pred_fallthru
        _
      // Predicated region
      $region69: #{forward.1} parent=51 // pred_check
        %p623 = pneg %p235
      $region70: #{forward.1} parent=51 // pred_check_branch
        %625 = sbr.rel (%p623) target = $region72
      $region71: #{forward.1} parent=51 // pred_region
        %p626 = scmp.lt.s32.totalorder %s27, 1
        %s627 = scalar_select %p626, %s27, 1
        %s628 = scalar_lea.vmem %s8, %s627
      $region72: #{forward.1} parent=51 // pred_fallthru
        _
      // Predicated region
      $region73: #{forward.1} parent=51 // pred_check
        %p629 = pneg %p261
      $region74: #{forward.1} parent=51 // pred_check_branch
        %631 = sbr.rel (%p629) target = $region76
      $region75: #{forward.1} parent=51 // pred_region
        %p632 = scmp.lt.s32.totalorder %s27, 1
        %s633 = scalar_select %p632, %s27, 1
        %s634 = scalar_lea.vmem %s9, %s633
      $region76: #{forward.1} parent=51 // pred_fallthru
        _
      // Predicated region
      $region77: #{forward.1} parent=51 // pred_check
        %p635 = pneg %p287
      $region78: #{forward.1} parent=51 // pred_check_branch
        %637 = sbr.rel (%p635) target = $region80
      $region79: #{forward.1} parent=51 // pred_region
        %p638 = scmp.lt.s32.totalorder %s27, 1
        %s639 = scalar_select %p638, %s27, 1
        %s640 = smul.addr %s639, 4
        %s641 = smul.addr %s640, 8
        %s642 = scalar_lea.vmem %s10, %s641
      $region80: #{forward.1} parent=51 // pred_fallthru
        _
      // Predicated region
      $region81: #{forward.1} parent=51 // pred_check
        %p643 = pneg %p313
      $region82: #{forward.1} parent=51 // pred_check_branch
        %645 = sbr.rel (%p643) target = $region84
      $region83: #{forward.1} parent=51 // pred_region
        %p646 = scmp.lt.s32.totalorder %s27, 1
        %s647 = scalar_select %p646, %s27, 1
        %s648 = scalar_lea.vmem %s11, %s647
      $region84: #{forward.1} parent=51 // pred_fallthru
        _
      // Predicated region
      $region85: #{forward.1} parent=51 // pred_check
        %p649 = pneg %p339
      $region86: #{forward.1} parent=51 // pred_check_branch
        %651 = sbr.rel (%p649) target = $region88
      $region87: #{forward.1} parent=51 // pred_region
        %p652 = scmp.lt.s32.totalorder %s27, 1
        %s653 = scalar_select %p652, %s27, 1
        %s654 = smul.addr %s653, 8
        %s655 = smul.addr %s654, 8
        %s656 = scalar_lea.vmem %s12, %s655
      $region88: #{forward.1} parent=51 // pred_fallthru
        _
      // Predicated region
      $region89: #{forward.1} parent=51 // pred_check
        %p657 = pneg %p365
      $region90: #{forward.1} parent=51 // pred_check_branch
        %659 = sbr.rel (%p657) target = $region92
      $region91: #{forward.1} parent=51 // pred_region
        %p660 = scmp.lt.s32.totalorder %s27, 1
        %s661 = scalar_select %p660, %s27, 1
        %s662 = scalar_lea.vmem %s13, %s661
      $region92: #{forward.1} parent=51 // pred_fallthru
        _
      // Predicated region
      $region93: #{forward.1} parent=51 // pred_check
        %p663 = pneg %p391
      $region94: #{forward.1} parent=51 // pred_check_branch
        %665 = sbr.rel (%p663) target = $region96
      $region95: #{forward.1} parent=51 // pred_region
        %p666 = scmp.lt.s32.totalorder %s27, 1
        %s667 = scalar_select %p666, %s27, 1
        %s668 = scalar_lea.vmem %s14, %s667
      $region96: #{forward.1} parent=51 // pred_fallthru
        _
      // Predicated region
      $region97: #{forward.1} parent=51 // pred_check
        %p669 = pneg %p417
      $region98: #{forward.1} parent=51 // pred_check_branch
        %671 = sbr.rel (%p669) target = $region100
      $region99: #{forward.1} parent=51 // pred_region
        %p672 = scmp.lt.s32.totalorder %s27, 1
        %s673 = scalar_select %p672, %s27, 1
        %s674 = scalar_lea.vmem %s15, %s673
      $region100: #{forward.1} parent=51 // pred_fallthru
        _
    $region52: #{forward.1} parent=5 // pred_fallthru
      _
    %p675 = scmp.le.s32.totalorder 1, %s27
    %p676 = scmp.lt.s32.totalorder %s27, 3
    %p677 = pnand %p675, %p676
    %p678 = pneg %p677
    // Predicated region
    $region101: #{forward.1} parent=5 // pred_check
      _
    $region102: #{forward.1} parent=5 // pred_check_branch
      %680 = sbr.rel (%p677) target = $region104
    $region103: #{forward.1} parent=5 // pred_region
      %s681 = ssub.s32 %s27, 1
      %p682 = pneg %p48
      %p683 = pneg %p45
      %p684 = pneg %p69
      %p685 = pneg %p66
      %p686 = pneg %p90
      %p687 = pneg %p87
      %p688 = pneg %p111
      %p689 = pneg %p108
      %p690 = scmp.lt.s32.totalorder %s32, 1
      %s691 = scalar_select %p690, %s32, 1
      %s692 = smul.addr %s691, 4
      %s693 = smul.addr %s692, 8
      %s694 = scalar_lea.vmem %s4, %s693
      %p695 = pneg %p137
      %p696 = pneg %p134
      %p697 = scmp.lt.s32.totalorder %s32, 1
      %s698 = scalar_select %p697, %s32, 1
      %s699 = scalar_lea.vmem %s5, %s698
      %p700 = pneg %p163
      %p701 = pneg %p160
      %p702 = scmp.lt.s32.totalorder %s32, 1
      %s703 = scalar_select %p702, %s32, 1
      %s704 = smul.addr %s703, 4
      %s705 = smul.addr %s704, 8
      %s706 = scalar_lea.vmem %s6, %s705
      %p707 = pneg %p189
      %p708 = pneg %p186
      %p709 = scmp.lt.s32.totalorder %s32, 1
      %s710 = scalar_select %p709, %s32, 1
      %s711 = scalar_lea.vmem %s7, %s710
      %p712 = pneg %p215
      %p713 = pneg %p212
      %p714 = scmp.lt.s32.totalorder %s32, 1
      %s715 = scalar_select %p714, %s32, 1
      %s716 = scalar_lea.vmem %s8, %s715
      %p717 = pneg %p241
      %p718 = pneg %p238
      %p719 = scmp.lt.s32.totalorder %s32, 1
      %s720 = scalar_select %p719, %s32, 1
      %s721 = scalar_lea.vmem %s9, %s720
      %p722 = pneg %p267
      %p723 = pneg %p264
      %p724 = scmp.lt.s32.totalorder %s32, 1
      %s725 = scalar_select %p724, %s32, 1
      %s726 = smul.addr %s725, 4
      %s727 = smul.addr %s726, 8
      %s728 = scalar_lea.vmem %s10, %s727
      %p729 = pneg %p293
      %p730 = pneg %p290
      %p731 = scmp.lt.s32.totalorder %s32, 1
      %s732 = scalar_select %p731, %s32, 1
      %s733 = scalar_lea.vmem %s11, %s732
      %p734 = pneg %p319
      %p735 = pneg %p316
      %p736 = scmp.lt.s32.totalorder %s32, 1
      %s737 = scalar_select %p736, %s32, 1
      %s738 = smul.addr %s737, 8
      %s739 = smul.addr %s738, 8
      %s740 = scalar_lea.vmem %s12, %s739
      %p741 = pneg %p345
      %p742 = pneg %p342
      %p743 = scmp.lt.s32.totalorder %s32, 1
      %s744 = scalar_select %p743, %s32, 1
      %s745 = scalar_lea.vmem %s13, %s744
      %p746 = pneg %p371
      %p747 = pneg %p368
      %p748 = scmp.lt.s32.totalorder %s32, 1
      %s749 = scalar_select %p748, %s32, 1
      %s750 = scalar_lea.vmem %s14, %s749
      %p751 = pneg %p397
      %p752 = pneg %p394
      %p753 = scmp.lt.s32.totalorder %s32, 1
      %s754 = scalar_select %p753, %s32, 1
      %s755 = scalar_lea.vmem %s15, %s754
      %p756 = pneg %p423
      %p757 = pneg %p420
      %p758 = pneg %p444
      %p759 = pneg %p441
      %p760 = pneg %p465
      %p761 = pneg %p462
      %p762 = pneg %p486
      %p763 = pneg %p483
      %p764 = pneg %p507
      %p765 = pneg %p504
      %p766 = pneg %p528
      %p767 = pneg %p525
      %p768 = pneg %p549
      %p769 = pneg %p546
      %p770 = scmp.lt.s32.totalorder %s32, 1
      %s771 = scalar_select %p770, %s32, 1
      %s772 = smul.addr %s771, 4
      %s773 = smul.addr %s772, 8
      %s774 = scalar_lea.vmem %s4, %s773
      %p775 = scmp.lt.s32.totalorder %s32, 1
      %s776 = scalar_select %p775, %s32, 1
      %s777 = scalar_lea.vmem %s5, %s776
      %p778 = scmp.lt.s32.totalorder %s32, 1
      %s779 = scalar_select %p778, %s32, 1
      %s780 = smul.addr %s779, 4
      %s781 = smul.addr %s780, 8
      %s782 = scalar_lea.vmem %s6, %s781
      %p783 = scmp.lt.s32.totalorder %s32, 1
      %s784 = scalar_select %p783, %s32, 1
      %s785 = scalar_lea.vmem %s7, %s784
      %p786 = scmp.lt.s32.totalorder %s32, 1
      %s787 = scalar_select %p786, %s32, 1
      %s788 = scalar_lea.vmem %s8, %s787
      %p789 = scmp.lt.s32.totalorder %s32, 1
      %s790 = scalar_select %p789, %s32, 1
      %s791 = scalar_lea.vmem %s9, %s790
      %p792 = scmp.lt.s32.totalorder %s32, 1
      %s793 = scalar_select %p792, %s32, 1
      %s794 = smul.addr %s793, 4
      %s795 = smul.addr %s794, 8
      %s796 = scalar_lea.vmem %s10, %s795
      %p797 = scmp.lt.s32.totalorder %s32, 1
      %s798 = scalar_select %p797, %s32, 1
      %s799 = scalar_lea.vmem %s11, %s798
      %p800 = scmp.lt.s32.totalorder %s32, 1
      %s801 = scalar_select %p800, %s32, 1
      %s802 = smul.addr %s801, 8
      %s803 = smul.addr %s802, 8
      %s804 = scalar_lea.vmem %s12, %s803
      %p805 = scmp.lt.s32.totalorder %s32, 1
      %s806 = scalar_select %p805, %s32, 1
      %s807 = scalar_lea.vmem %s13, %s806
      %p808 = scmp.lt.s32.totalorder %s32, 1
      %s809 = scalar_select %p808, %s32, 1
      %s810 = scalar_lea.vmem %s14, %s809
      %p811 = scmp.lt.s32.totalorder %s32, 1
      %s812 = scalar_select %p811, %s32, 1
      %s813 = scalar_lea.vmem %s15, %s812
      %p814 = scmp.eq.s32.totalorder %s32, 0
      // Predicated region
      $region105: #{forward.1} parent=103 // pred_check
        %p815 = pneg %p814
      $region106: #{forward.1} parent=103 // pred_check_branch
        %817 = sbr.rel (%p815) target = $region108
      $region107: #{forward.1} parent=103 // pred_region
        %v818 = vld [vmem:[%s0] sm:$0xff]
        %v819 = vld [vmem:[%s0 + $0x8] sm:$0xff]
        %v820 = vld [vmem:[%s2] sm:$0x1]
        %v821 = vld [vmem:[%s3] sm:$0x1]
        %vm822 = vcmask 261120
        %v823 = vsel %vm822, %v818, 0.0
        %824 = vadd.xlane.f32.xlu0 %v823
        %v825 = vpop.xlane.xlu0 %824
        %v826 = vsel %vm822, %v819, 0.0
        %827 = vadd.xlane.f32.xlu0 %v826
        %v828 = vpop.xlane.xlu0 %827
        %v829 = vrcp.pop 32.0
        %v830 = vmul.f32 32.0, %v829
        %v831 = vsub.f32 1.0, %v830
        %v832 = vmul.f32 %v829, %v831
        %v833 = vadd.f32 %v829, %v832
        %vm834 = vweird.f32 %v829
        %v835 = vsel %vm834, %v829, %v833
        %v836 = vmul.f32 %v825, %v835
        %v837 = vmul.f32 %v828, %v835
        %v838 = vsub.f32 %v818, %v836
        %v839 = vsub.f32 %v819, %v837
        %v840 = vmul.f32 %v838, %v838
        %v841 = vmul.f32 %v839, %v839
        %v842 = vsel %vm822, %v840, 0.0
        %843 = vadd.xlane.f32.xlu0 %v842
        %v844 = vpop.xlane.xlu0 %843
        %v845 = vsel %vm822, %v841, 0.0
        %846 = vadd.xlane.f32.xlu0 %v845
        %v847 = vpop.xlane.xlu0 %846
        %v848 = vmul.f32 %v844, %v835
        %v849 = vmul.f32 %v847, %v835
        %v850 = vadd.f32 %v848, 1e-05
        %v851 = vadd.f32 %v849, 1e-05
        %v852 = vrsqrt.pop %v850
        %v853 = vmul.f32 %v852, %v850
        %v854 = vmul.f32 %v853, %v852
        %v855 = vmul.f32 0.5, %v854
        %v856 = vsub.f32 1.5, %v855
        %v857 = vmul.f32 %v852, %v856
        %vm858 = vweird.f32 %v850
        %vm859 = vweird.f32 %v852
        %vm860 = vmor %vm858, %vm859
        %v861 = vsel %vm860, %v852, %v857
        %v862 = vrsqrt.pop %v851
        %v863 = vmul.f32 %v862, %v851
        %v864 = vmul.f32 %v863, %v862
        %v865 = vmul.f32 0.5, %v864
        %v866 = vsub.f32 1.5, %v865
        %v867 = vmul.f32 %v862, %v866
        %vm868 = vweird.f32 %v851
        %vm869 = vweird.f32 %v862
        %vm870 = vmor %vm868, %vm869
        %v871 = vsel %vm870, %v862, %v867
        %v872 = vmul.f32 %v838, %v861
        %v873 = vmul.f32 %v839, %v871
        %v875 = vperm.slane %v820, 0
        %v877 = vmul.f32 %v872, %v875
        %v878 = vmul.f32 %v873, %v875
        %v880 = vperm.slane %v821, 0
        %v882 = vadd.f32 %v877, %v880
        %v883 = vadd.f32 %v878, %v880
        %884 = vst.msk [vmem:[#allocation2] sm:$0xff] %vm822, %v882
        %885 = vst.msk [vmem:[#allocation2 + $0x8] sm:$0xff] %vm822, %v883
      $region108: #{forward.1} parent=103 // pred_fallthru
        _
      %v886 = vld [vmem:[#allocation2] sm:$0xff]
      %v887 = vld [vmem:[#allocation2 + $0x8] sm:$0xff]
      %v888 = vld [vmem:[%s774] sm:$0xff]
      %v889 = vld [vmem:[%s774 + $0x8] sm:$0xff]
      %v890 = vld [vmem:[%s774 + $0x10] sm:$0xff]
      %v891 = vld [vmem:[%s774 + $0x18] sm:$0xff]
      %v892 = vld [vmem:[%s777] sm:$0x1]
      %v894 = vperm.slane %v892, 0
      %vm896 = vcmask 261120
      %v898 = vsel %vm896, %v886, 0
      %v901 = vsel %vm896, %v887, 0
      %903 = vmatpush.msra.mxu0 0.0
      %904 = vmatpush.msra.mxu0 0.0
      %905 = vmatpush.msra.mxu0 0.0
      %906 = vmatpush.msra.mxu0 0.0
      %907 = vmatpush.msra.mxu0 0.0
      %908 = vmatpush.msra.mxu0 0.0
      %909 = vmatpush.msra.mxu0 0.0
      %910 = vmatpush.msra.mxu0 0.0
      %911 = vmatpush.msra.mxu0 0.0
      %912 = vmatpush.msra.mxu0 0.0
      %913 = vmatpush.msra.mxu0 0.0
      %914 = vmatpush.msra.mxu0 0.0
      %915 = vmatpush.msra.mxu0 %v891
      %916 = vmatpush.msra.mxu0 %v890
      %917 = vmatpush.msra.mxu0 %v889
      %918 = vmatpush.msra.mxu0 %v888
      %919 = vmatmul.f32.gmra.mxu0 %v898
      %v920 = vpop.f32.mrf.mxu0
      %v921 = vadd.f32 %v894, %v920
      %922 = vmatmul.f32.gmra.mxu0 %v901
      %v923 = vpop.f32.mrf.mxu0
      %v924 = vadd.f32 %v894, %v923
      %925 = vdwg.mxu0
      %v926 = vld [vmem:[%s1] sm:$0x3]
      %v927 = vsub.f32 1.0, %v926
      %v928 = vmul.f32 %v927, -1e+09
      %930 = vrot.lane.b32.xlu0 %v921, 96
      %v931 = vpop.permute.xlu0 %930
      %vm932 = vcmask 64512
      %v933 = vsel %vm932, %v921, 0
      %v935 = vsel %vm932, %v931, 0
      %937 = vmatpush.xpose.msra.mxu0 0.0
      %938 = vmatpush.xpose.msra.mxu0 0.0
      %939 = vmatpush.xpose.msra.mxu0 0.0
      %940 = vmatpush.xpose.msra.mxu0 0.0
      %941 = vmatpush.xpose.msra.mxu0 0.0
      %942 = vmatpush.xpose.msra.mxu0 0.0
      %943 = vmatpush.xpose.msra.mxu0 0.0
      %944 = vmatpush.xpose.msra.mxu0 0.0
      %945 = vmatpush.xpose.msra.mxu0 0.0
      %946 = vmatpush.xpose.msra.mxu0 0.0
      %947 = vmatpush.xpose.msra.mxu0 0.0
      %948 = vmatpush.xpose.msra.mxu0 0.0
      %949 = vmatpush.xpose.msra.mxu0 0.0
      %950 = vmatpush.xpose.msra.mxu0 0.0
      %951 = vmatpush.xpose.msra.mxu0 0.0
      %952 = vmatpush.xpose.msra.mxu0 %v935
      %953 = vmatmul.f32.gmra.mxu0 %v933
      %v954 = vpop.f32.mrf.mxu0
      %v955 = vadd.f32 0.0, %v954
      %956 = vdwg.mxu0
      %v957 = vmul.f32 %v955, 0.35355338
      %v958 = vperm.slane %v928, 0
      %v959 = vadd.f32 %v957, %v958
      %v960 = vsel %vm932, %v959, -inf
      %961 = vmax.xlane.f32.xlu0 %v960
      %v962 = vpop.xlane.xlu0 %961
      %v963 = vsub.f32 %v959, %v962
      %v964 = vmul.f32 %v963, 1.442695
      %v965 = vpow.pop %v964
      %v966 = vsel %vm932, %v965, 0.0
      %967 = vadd.xlane.f32.xlu0 %v966
      %v968 = vpop.xlane.xlu0 %967
      %v969 = vrcp.pop %v968
      %v970 = vmul.f32 %v968, %v969
      %v971 = vsub.f32 1.0, %v970
      %v972 = vmul.f32 %v969, %v971
      %v973 = vadd.f32 %v969, %v972
      %vm974 = vweird.f32 %v968
      %vm975 = vweird.f32 %v969
      %vm976 = vmor %vm974, %vm975
      %v977 = vsel %vm976, %v969, %v973
      %v978 = vand.u32 2147483647, %v968
      %vm979 = vcmp.eq.f32.partialorder %v978, 8.507059e+37
      %v980 = vand.u32 %v968, 2147483648
      %v981 = vor.u32 1.1754944e-38, %v980
      %v982 = vsel %vm979, %v981, %v977
      %v983 = vmul.f32 %v965, %v982
      %984 = vrot.lane.b32.xlu0 %v921, 64
      %v985 = vpop.permute.xlu0 %984
      %v988 = vsel %vm932, %v983, 0
      %990 = vmatpush.msra.mxu0 0.0
      %991 = vmatpush.msra.mxu0 0.0
      %992 = vmatpush.msra.mxu0 0.0
      %993 = vmatpush.msra.mxu0 0.0
      %994 = vmatpush.msra.mxu0 0.0
      %995 = vmatpush.msra.mxu0 0.0
      %996 = vmatpush.msra.mxu0 0.0
      %997 = vmatpush.msra.mxu0 0.0
      %998 = vmatpush.msra.mxu0 0.0
      %999 = vmatpush.msra.mxu0 0.0
      %1000 = vmatpush.msra.mxu0 0.0
      %1001 = vmatpush.msra.mxu0 0.0
      %1002 = vmatpush.msra.mxu0 0.0
      %1003 = vmatpush.msra.mxu0 0.0
      %1004 = vmatpush.msra.mxu0 0.0
      %1005 = vmatpush.msra.mxu0 %v985
      %1006 = vmatmul.f32.gmra.mxu0 %v988
      %v1007 = vpop.f32.mrf.mxu0
      %v1008 = vadd.f32 0.0, %v1007
      %1009 = vdwg.mxu0
      %1010 = vrot.lane.b32.xlu0 %v921, 120
      %v1011 = vpop.permute.xlu0 %1010
      %1012 = vrot.lane.b32.xlu0 %v921, 88
      %v1013 = vpop.permute.xlu0 %1012
      %v1014 = vsel %vm932, %v1011, 0
      %v1016 = vsel %vm932, %v1013, 0
      %1018 = vmatpush.xpose.msra.mxu0 0.0
      %1019 = vmatpush.xpose.msra.mxu0 0.0
      %1020 = vmatpush.xpose.msra.mxu0 0.0
      %1021 = vmatpush.xpose.msra.mxu0 0.0
      %1022 = vmatpush.xpose.msra.mxu0 0.0
      %1023 = vmatpush.xpose.msra.mxu0 0.0
      %1024 = vmatpush.xpose.msra.mxu0 0.0
      %1025 = vmatpush.xpose.msra.mxu0 0.0
      %1026 = vmatpush.xpose.msra.mxu0 0.0
      %1027 = vmatpush.xpose.msra.mxu0 0.0
      %1028 = vmatpush.xpose.msra.mxu0 0.0
      %1029 = vmatpush.xpose.msra.mxu0 0.0
      %1030 = vmatpush.xpose.msra.mxu0 0.0
      %1031 = vmatpush.xpose.msra.mxu0 0.0
      %1032 = vmatpush.xpose.msra.mxu0 0.0
      %1033 = vmatpush.xpose.msra.mxu0 %v1016
      %1034 = vmatmul.f32.gmra.mxu0 %v1014
      %v1035 = vpop.f32.mrf.mxu0
      %v1036 = vadd.f32 0.0, %v1035
      %1037 = vdwg.mxu0
      %v1038 = vmul.f32 %v1036, 0.35355338
      %v1039 = vadd.f32 %v1038, %v958
      %v1040 = vsel %vm932, %v1039, -inf
      %1041 = vmax.xlane.f32.xlu0 %v1040
      %v1042 = vpop.xlane.xlu0 %1041
      %v1043 = vsub.f32 %v1039, %v1042
      %v1044 = vmul.f32 %v1043, 1.442695
      %v1045 = vpow.pop %v1044
      %v1046 = vsel %vm932, %v1045, 0.0
      %1047 = vadd.xlane.f32.xlu0 %v1046
      %v1048 = vpop.xlane.xlu0 %1047
      %v1049 = vrcp.pop %v1048
      %v1050 = vmul.f32 %v1048, %v1049
      %v1051 = vsub.f32 1.0, %v1050
      %v1052 = vmul.f32 %v1049, %v1051
      %v1053 = vadd.f32 %v1049, %v1052
      %vm1054 = vweird.f32 %v1048
      %vm1055 = vweird.f32 %v1049
      %vm1056 = vmor %vm1054, %vm1055
      %v1057 = vsel %vm1056, %v1049, %v1053
      %v1058 = vand.u32 2147483647, %v1048
      %vm1059 = vcmp.eq.f32.partialorder %v1058, 8.507059e+37
      %v1060 = vand.u32 %v1048, 2147483648
      %v1061 = vor.u32 1.1754944e-38, %v1060
      %v1062 = vsel %vm1059, %v1061, %v1057
      %v1063 = vmul.f32 %v1045, %v1062
      %1064 = vrot.lane.b32.xlu0 %v921, 56
      %v1065 = vpop.permute.xlu0 %1064
      %v1068 = vsel %vm932, %v1063, 0
      %1070 = vmatpush.msra.mxu0 0.0
      %1071 = vmatpush.msra.mxu0 0.0
      %1072 = vmatpush.msra.mxu0 0.0
      %1073 = vmatpush.msra.mxu0 0.0
      %1074 = vmatpush.msra.mxu0 0.0
      %1075 = vmatpush.msra.mxu0 0.0
      %1076 = vmatpush.msra.mxu0 0.0
      %1077 = vmatpush.msra.mxu0 0.0
      %1078 = vmatpush.msra.mxu0 0.0
      %1079 = vmatpush.msra.mxu0 0.0
      %1080 = vmatpush.msra.mxu0 0.0
      %1081 = vmatpush.msra.mxu0 0.0
      %1082 = vmatpush.msra.mxu0 0.0
      %1083 = vmatpush.msra.mxu0 0.0
      %1084 = vmatpush.msra.mxu0 0.0
      %1085 = vmatpush.msra.mxu0 %v1065
      %1086 = vmatmul.f32.gmra.mxu0 %v1068
      %v1087 = vpop.f32.mrf.mxu0
      %v1088 = vadd.f32 0.0, %v1087
      %1089 = vdwg.mxu0
      %1090 = vrot.lane.b32.xlu0 %v921, 112
      %v1091 = vpop.permute.xlu0 %1090
      %1092 = vrot.lane.b32.xlu0 %v921, 80
      %v1093 = vpop.permute.xlu0 %1092
      %v1094 = vsel %vm932, %v1091, 0
      %v1096 = vsel %vm932, %v1093, 0
      %1098 = vmatpush.xpose.msra.mxu0 0.0
      %1099 = vmatpush.xpose.msra.mxu0 0.0
      %1100 = vmatpush.xpose.msra.mxu0 0.0
      %1101 = vmatpush.xpose.msra.mxu0 0.0
      %1102 = vmatpush.xpose.msra.mxu0 0.0
      %1103 = vmatpush.xpose.msra.mxu0 0.0
      %1104 = vmatpush.xpose.msra.mxu0 0.0
      %1105 = vmatpush.xpose.msra.mxu0 0.0
      %1106 = vmatpush.xpose.msra.mxu0 0.0
      %1107 = vmatpush.xpose.msra.mxu0 0.0
      %1108 = vmatpush.xpose.msra.mxu0 0.0
      %1109 = vmatpush.xpose.msra.mxu0 0.0
      %1110 = vmatpush.xpose.msra.mxu0 0.0
      %1111 = vmatpush.xpose.msra.mxu0 0.0
      %1112 = vmatpush.xpose.msra.mxu0 0.0
      %1113 = vmatpush.xpose.msra.mxu0 %v1096
      %1114 = vmatmul.f32.gmra.mxu0 %v1094
      %v1115 = vpop.f32.mrf.mxu0
      %v1116 = vadd.f32 0.0, %v1115
      %1117 = vdwg.mxu0
      %v1118 = vmul.f32 %v1116, 0.35355338
      %v1119 = vadd.f32 %v1118, %v958
      %v1120 = vsel %vm932, %v1119, -inf
      %1121 = vmax.xlane.f32.xlu0 %v1120
      %v1122 = vpop.xlane.xlu0 %1121
      %v1123 = vsub.f32 %v1119, %v1122
      %v1124 = vmul.f32 %v1123, 1.442695
      %v1125 = vpow.pop %v1124
      %v1126 = vsel %vm932, %v1125, 0.0
      %1127 = vadd.xlane.f32.xlu0 %v1126
      %v1128 = vpop.xlane.xlu0 %1127
      %v1129 = vrcp.pop %v1128
      %v1130 = vmul.f32 %v1128, %v1129
      %v1131 = vsub.f32 1.0, %v1130
      %v1132 = vmul.f32 %v1129, %v1131
      %v1133 = vadd.f32 %v1129, %v1132
      %vm1134 = vweird.f32 %v1128
      %vm1135 = vweird.f32 %v1129
      %vm1136 = vmor %vm1134, %vm1135
      %v1137 = vsel %vm1136, %v1129, %v1133
      %v1138 = vand.u32 2147483647, %v1128
      %vm1139 = vcmp.eq.f32.partialorder %v1138, 8.507059e+37
      %v1140 = vand.u32 %v1128, 2147483648
      %v1141 = vor.u32 1.1754944e-38, %v1140
      %v1142 = vsel %vm1139, %v1141, %v1137
      %v1143 = vmul.f32 %v1125, %v1142
      %1144 = vrot.lane.b32.xlu0 %v921, 48
      %v1145 = vpop.permute.xlu0 %1144
      %v1148 = vsel %vm932, %v1143, 0
      %1150 = vmatpush.msra.mxu0 0.0
      %1151 = vmatpush.msra.mxu0 0.0
      %1152 = vmatpush.msra.mxu0 0.0
      %1153 = vmatpush.msra.mxu0 0.0
      %1154 = vmatpush.msra.mxu0 0.0
      %1155 = vmatpush.msra.mxu0 0.0
      %1156 = vmatpush.msra.mxu0 0.0
      %1157 = vmatpush.msra.mxu0 0.0
      %1158 = vmatpush.msra.mxu0 0.0
      %1159 = vmatpush.msra.mxu0 0.0
      %1160 = vmatpush.msra.mxu0 0.0
      %1161 = vmatpush.msra.mxu0 0.0
      %1162 = vmatpush.msra.mxu0 0.0
      %1163 = vmatpush.msra.mxu0 0.0
      %1164 = vmatpush.msra.mxu0 0.0
      %1165 = vmatpush.msra.mxu0 %v1145
      %1166 = vmatmul.f32.gmra.mxu0 %v1148
      %v1167 = vpop.f32.mrf.mxu0
      %v1168 = vadd.f32 0.0, %v1167
      %1169 = vdwg.mxu0
      %1170 = vrot.lane.b32.xlu0 %v921, 104
      %v1171 = vpop.permute.xlu0 %1170
      %1172 = vrot.lane.b32.xlu0 %v921, 72
      %v1173 = vpop.permute.xlu0 %1172
      %v1174 = vsel %vm932, %v1171, 0
      %v1176 = vsel %vm932, %v1173, 0
      %1178 = vmatpush.xpose.msra.mxu0 0.0
      %1179 = vmatpush.xpose.msra.mxu0 0.0
      %1180 = vmatpush.xpose.msra.mxu0 0.0
      %1181 = vmatpush.xpose.msra.mxu0 0.0
      %1182 = vmatpush.xpose.msra.mxu0 0.0
      %1183 = vmatpush.xpose.msra.mxu0 0.0
      %1184 = vmatpush.xpose.msra.mxu0 0.0
      %1185 = vmatpush.xpose.msra.mxu0 0.0
      %1186 = vmatpush.xpose.msra.mxu0 0.0
      %1187 = vmatpush.xpose.msra.mxu0 0.0
      %1188 = vmatpush.xpose.msra.mxu0 0.0
      %1189 = vmatpush.xpose.msra.mxu0 0.0
      %1190 = vmatpush.xpose.msra.mxu0 0.0
      %1191 = vmatpush.xpose.msra.mxu0 0.0
      %1192 = vmatpush.xpose.msra.mxu0 0.0
      %1193 = vmatpush.xpose.msra.mxu0 %v1176
      %1194 = vmatmul.f32.gmra.mxu0 %v1174
      %v1195 = vpop.f32.mrf.mxu0
      %v1196 = vadd.f32 0.0, %v1195
      %1197 = vdwg.mxu0
      %v1198 = vmul.f32 %v1196, 0.35355338
      %v1199 = vadd.f32 %v1198, %v958
      %v1200 = vsel %vm932, %v1199, -inf
      %1201 = vmax.xlane.f32.xlu0 %v1200
      %v1202 = vpop.xlane.xlu0 %1201
      %v1203 = vsub.f32 %v1199, %v1202
      %v1204 = vmul.f32 %v1203, 1.442695
      %v1205 = vpow.pop %v1204
      %v1206 = vsel %vm932, %v1205, 0.0
      %1207 = vadd.xlane.f32.xlu0 %v1206
      %v1208 = vpop.xlane.xlu0 %1207
      %v1209 = vrcp.pop %v1208
      %v1210 = vmul.f32 %v1208, %v1209
      %v1211 = vsub.f32 1.0, %v1210
      %v1212 = vmul.f32 %v1209, %v1211
      %v1213 = vadd.f32 %v1209, %v1212
      %vm1214 = vweird.f32 %v1208
      %vm1215 = vweird.f32 %v1209
      %vm1216 = vmor %vm1214, %vm1215
      %v1217 = vsel %vm1216, %v1209, %v1213
      %v1218 = vand.u32 2147483647, %v1208
      %vm1219 = vcmp.eq.f32.partialorder %v1218, 8.507059e+37
      %v1220 = vand.u32 %v1208, 2147483648
      %v1221 = vor.u32 1.1754944e-38, %v1220
      %v1222 = vsel %vm1219, %v1221, %v1217
      %v1223 = vmul.f32 %v1205, %v1222
      %1224 = vrot.lane.b32.xlu0 %v921, 40
      %v1225 = vpop.permute.xlu0 %1224
      %v1228 = vsel %vm932, %v1223, 0
      %1230 = vmatpush.msra.mxu0 0.0
      %1231 = vmatpush.msra.mxu0 0.0
      %1232 = vmatpush.msra.mxu0 0.0
      %1233 = vmatpush.msra.mxu0 0.0
      %1234 = vmatpush.msra.mxu0 0.0
      %1235 = vmatpush.msra.mxu0 0.0
      %1236 = vmatpush.msra.mxu0 0.0
      %1237 = vmatpush.msra.mxu0 0.0
      %1238 = vmatpush.msra.mxu0 0.0
      %1239 = vmatpush.msra.mxu0 0.0
      %1240 = vmatpush.msra.mxu0 0.0
      %1241 = vmatpush.msra.mxu0 0.0
      %1242 = vmatpush.msra.mxu0 0.0
      %1243 = vmatpush.msra.mxu0 0.0
      %1244 = vmatpush.msra.mxu0 0.0
      %1245 = vmatpush.msra.mxu0 %v1225
      %1246 = vmatmul.f32.gmra.mxu0 %v1228
      %v1247 = vpop.f32.mrf.mxu0
      %v1248 = vadd.f32 0.0, %v1247
      %1249 = vdwg.mxu0
      %1251 = vrot.lane.b32.xlu0 %v1088, 8
      %v1252 = vpop.permute.xlu0 %1251
      %1255 = vrot.lane.b32.xlu0 %v1168, 16
      %v1256 = vpop.permute.xlu0 %1255
      %1259 = vrot.lane.b32.xlu0 %v1248, 24
      %v1260 = vpop.permute.xlu0 %1259
      %v1262 = vsel %vm932, %v1008, %v1252
      %vm1263 = vcmask 130048
      %v1264 = vsel %vm1263, %v1262, %v1256
      %vm1265 = vcmask 195584
      %v1266 = vsel %vm1265, %v1264, %v1260
      %1268 = vrot.lane.b32.xlu0 %v924, 96
      %v1269 = vpop.permute.xlu0 %1268
      %v1270 = vsel %vm932, %v924, 0
      %v1272 = vsel %vm932, %v1269, 0
      %1274 = vmatpush.xpose.msra.mxu0 0.0
      %1275 = vmatpush.xpose.msra.mxu0 0.0
      %1276 = vmatpush.xpose.msra.mxu0 0.0
      %1277 = vmatpush.xpose.msra.mxu0 0.0
      %1278 = vmatpush.xpose.msra.mxu0 0.0
      %1279 = vmatpush.xpose.msra.mxu0 0.0
      %1280 = vmatpush.xpose.msra.mxu0 0.0
      %1281 = vmatpush.xpose.msra.mxu0 0.0
      %1282 = vmatpush.xpose.msra.mxu0 0.0
      %1283 = vmatpush.xpose.msra.mxu0 0.0
      %1284 = vmatpush.xpose.msra.mxu0 0.0
      %1285 = vmatpush.xpose.msra.mxu0 0.0
      %1286 = vmatpush.xpose.msra.mxu0 0.0
      %1287 = vmatpush.xpose.msra.mxu0 0.0
      %1288 = vmatpush.xpose.msra.mxu0 0.0
      %1289 = vmatpush.xpose.msra.mxu0 %v1272
      %1290 = vmatmul.f32.gmra.mxu0 %v1270
      %v1291 = vpop.f32.mrf.mxu0
      %v1292 = vadd.f32 0.0, %v1291
      %1293 = vdwg.mxu0
      %v1294 = vmul.f32 %v1292, 0.35355338
      %v1295 = vperm.slane %v928, 1
      %v1296 = vadd.f32 %v1294, %v1295
      %v1297 = vsel %vm932, %v1296, -inf
      %1298 = vmax.xlane.f32.xlu0 %v1297
      %v1299 = vpop.xlane.xlu0 %1298
      %v1300 = vsub.f32 %v1296, %v1299
      %v1301 = vmul.f32 %v1300, 1.442695
      %v1302 = vpow.pop %v1301
      %v1303 = vsel %vm932, %v1302, 0.0
      %1304 = vadd.xlane.f32.xlu0 %v1303
      %v1305 = vpop.xlane.xlu0 %1304
      %v1306 = vrcp.pop %v1305
      %v1307 = vmul.f32 %v1305, %v1306
      %v1308 = vsub.f32 1.0, %v1307
      %v1309 = vmul.f32 %v1306, %v1308
      %v1310 = vadd.f32 %v1306, %v1309
      %vm1311 = vweird.f32 %v1305
      %vm1312 = vweird.f32 %v1306
      %vm1313 = vmor %vm1311, %vm1312
      %v1314 = vsel %vm1313, %v1306, %v1310
      %v1315 = vand.u32 2147483647, %v1305
      %vm1316 = vcmp.eq.f32.partialorder %v1315, 8.507059e+37
      %v1317 = vand.u32 %v1305, 2147483648
      %v1318 = vor.u32 1.1754944e-38, %v1317
      %v1319 = vsel %vm1316, %v1318, %v1314
      %v1320 = vmul.f32 %v1302, %v1319
      %1321 = vrot.lane.b32.xlu0 %v924, 64
      %v1322 = vpop.permute.xlu0 %1321
      %v1325 = vsel %vm932, %v1320, 0
      %1327 = vmatpush.msra.mxu0 0.0
      %1328 = vmatpush.msra.mxu0 0.0
      %1329 = vmatpush.msra.mxu0 0.0
      %1330 = vmatpush.msra.mxu0 0.0
      %1331 = vmatpush.msra.mxu0 0.0
      %1332 = vmatpush.msra.mxu0 0.0
      %1333 = vmatpush.msra.mxu0 0.0
      %1334 = vmatpush.msra.mxu0 0.0
      %1335 = vmatpush.msra.mxu0 0.0
      %1336 = vmatpush.msra.mxu0 0.0
      %1337 = vmatpush.msra.mxu0 0.0
      %1338 = vmatpush.msra.mxu0 0.0
      %1339 = vmatpush.msra.mxu0 0.0
      %1340 = vmatpush.msra.mxu0 0.0
      %1341 = vmatpush.msra.mxu0 0.0
      %1342 = vmatpush.msra.mxu0 %v1322
      %1343 = vmatmul.f32.gmra.mxu0 %v1325
      %v1344 = vpop.f32.mrf.mxu0
      %v1345 = vadd.f32 0.0, %v1344
      %1346 = vdwg.mxu0
      %1347 = vrot.lane.b32.xlu0 %v924, 120
      %v1348 = vpop.permute.xlu0 %1347
      %1349 = vrot.lane.b32.xlu0 %v924, 88
      %v1350 = vpop.permute.xlu0 %1349
      %v1351 = vsel %vm932, %v1348, 0
      %v1353 = vsel %vm932, %v1350, 0
      %1355 = vmatpush.xpose.msra.mxu0 0.0
      %1356 = vmatpush.xpose.msra.mxu0 0.0
      %1357 = vmatpush.xpose.msra.mxu0 0.0
      %1358 = vmatpush.xpose.msra.mxu0 0.0
      %1359 = vmatpush.xpose.msra.mxu0 0.0
      %1360 = vmatpush.xpose.msra.mxu0 0.0
      %1361 = vmatpush.xpose.msra.mxu0 0.0
      %1362 = vmatpush.xpose.msra.mxu0 0.0
      %1363 = vmatpush.xpose.msra.mxu0 0.0
      %1364 = vmatpush.xpose.msra.mxu0 0.0
      %1365 = vmatpush.xpose.msra.mxu0 0.0
      %1366 = vmatpush.xpose.msra.mxu0 0.0
      %1367 = vmatpush.xpose.msra.mxu0 0.0
      %1368 = vmatpush.xpose.msra.mxu0 0.0
      %1369 = vmatpush.xpose.msra.mxu0 0.0
      %1370 = vmatpush.xpose.msra.mxu0 %v1353
      %1371 = vmatmul.f32.gmra.mxu0 %v1351
      %v1372 = vpop.f32.mrf.mxu0
      %v1373 = vadd.f32 0.0, %v1372
      %1374 = vdwg.mxu0
      %v1375 = vmul.f32 %v1373, 0.35355338
      %v1376 = vadd.f32 %v1375, %v1295
      %v1377 = vsel %vm932, %v1376, -inf
      %1378 = vmax.xlane.f32.xlu0 %v1377
      %v1379 = vpop.xlane.xlu0 %1378
      %v1380 = vsub.f32 %v1376, %v1379
      %v1381 = vmul.f32 %v1380, 1.442695
      %v1382 = vpow.pop %v1381
      %v1383 = vsel %vm932, %v1382, 0.0
      %1384 = vadd.xlane.f32.xlu0 %v1383
      %v1385 = vpop.xlane.xlu0 %1384
      %v1386 = vrcp.pop %v1385
      %v1387 = vmul.f32 %v1385, %v1386
      %v1388 = vsub.f32 1.0, %v1387
      %v1389 = vmul.f32 %v1386, %v1388
      %v1390 = vadd.f32 %v1386, %v1389
      %vm1391 = vweird.f32 %v1385
      %vm1392 = vweird.f32 %v1386
      %vm1393 = vmor %vm1391, %vm1392
      %v1394 = vsel %vm1393, %v1386, %v1390
      %v1395 = vand.u32 2147483647, %v1385
      %vm1396 = vcmp.eq.f32.partialorder %v1395, 8.507059e+37
      %v1397 = vand.u32 %v1385, 2147483648
      %v1398 = vor.u32 1.1754944e-38, %v1397
      %v1399 = vsel %vm1396, %v1398, %v1394
      %v1400 = vmul.f32 %v1382, %v1399
      %1401 = vrot.lane.b32.xlu0 %v924, 56
      %v1402 = vpop.permute.xlu0 %1401
      %v1405 = vsel %vm932, %v1400, 0
      %1407 = vmatpush.msra.mxu0 0.0
      %1408 = vmatpush.msra.mxu0 0.0
      %1409 = vmatpush.msra.mxu0 0.0
      %1410 = vmatpush.msra.mxu0 0.0
      %1411 = vmatpush.msra.mxu0 0.0
      %1412 = vmatpush.msra.mxu0 0.0
      %1413 = vmatpush.msra.mxu0 0.0
      %1414 = vmatpush.msra.mxu0 0.0
      %1415 = vmatpush.msra.mxu0 0.0
      %1416 = vmatpush.msra.mxu0 0.0
      %1417 = vmatpush.msra.mxu0 0.0
      %1418 = vmatpush.msra.mxu0 0.0
      %1419 = vmatpush.msra.mxu0 0.0
      %1420 = vmatpush.msra.mxu0 0.0
      %1421 = vmatpush.msra.mxu0 0.0
      %1422 = vmatpush.msra.mxu0 %v1402
      %1423 = vmatmul.f32.gmra.mxu0 %v1405
      %v1424 = vpop.f32.mrf.mxu0
      %v1425 = vadd.f32 0.0, %v1424
      %1426 = vdwg.mxu0
      %1427 = vrot.lane.b32.xlu0 %v924, 112
      %v1428 = vpop.permute.xlu0 %1427
      %1429 = vrot.lane.b32.xlu0 %v924, 80
      %v1430 = vpop.permute.xlu0 %1429
      %v1431 = vsel %vm932, %v1428, 0
      %v1433 = vsel %vm932, %v1430, 0
      %1435 = vmatpush.xpose.msra.mxu0 0.0
      %1436 = vmatpush.xpose.msra.mxu0 0.0
      %1437 = vmatpush.xpose.msra.mxu0 0.0
      %1438 = vmatpush.xpose.msra.mxu0 0.0
      %1439 = vmatpush.xpose.msra.mxu0 0.0
      %1440 = vmatpush.xpose.msra.mxu0 0.0
      %1441 = vmatpush.xpose.msra.mxu0 0.0
      %1442 = vmatpush.xpose.msra.mxu0 0.0
      %1443 = vmatpush.xpose.msra.mxu0 0.0
      %1444 = vmatpush.xpose.msra.mxu0 0.0
      %1445 = vmatpush.xpose.msra.mxu0 0.0
      %1446 = vmatpush.xpose.msra.mxu0 0.0
      %1447 = vmatpush.xpose.msra.mxu0 0.0
      %1448 = vmatpush.xpose.msra.mxu0 0.0
      %1449 = vmatpush.xpose.msra.mxu0 0.0
      %1450 = vmatpush.xpose.msra.mxu0 %v1433
      %1451 = vmatmul.f32.gmra.mxu0 %v1431
      %v1452 = vpop.f32.mrf.mxu0
      %v1453 = vadd.f32 0.0, %v1452
      %1454 = vdwg.mxu0
      %v1455 = vmul.f32 %v1453, 0.35355338
      %v1456 = vadd.f32 %v1455, %v1295
      %v1457 = vsel %vm932, %v1456, -inf
      %1458 = vmax.xlane.f32.xlu0 %v1457
      %v1459 = vpop.xlane.xlu0 %1458
      %v1460 = vsub.f32 %v1456, %v1459
      %v1461 = vmul.f32 %v1460, 1.442695
      %v1462 = vpow.pop %v1461
      %v1463 = vsel %vm932, %v1462, 0.0
      %1464 = vadd.xlane.f32.xlu0 %v1463
      %v1465 = vpop.xlane.xlu0 %1464
      %v1466 = vrcp.pop %v1465
      %v1467 = vmul.f32 %v1465, %v1466
      %v1468 = vsub.f32 1.0, %v1467
      %v1469 = vmul.f32 %v1466, %v1468
      %v1470 = vadd.f32 %v1466, %v1469
      %vm1471 = vweird.f32 %v1465
      %vm1472 = vweird.f32 %v1466
      %vm1473 = vmor %vm1471, %vm1472
      %v1474 = vsel %vm1473, %v1466, %v1470
      %v1475 = vand.u32 2147483647, %v1465
      %vm1476 = vcmp.eq.f32.partialorder %v1475, 8.507059e+37
      %v1477 = vand.u32 %v1465, 2147483648
      %v1478 = vor.u32 1.1754944e-38, %v1477
      %v1479 = vsel %vm1476, %v1478, %v1474
      %v1480 = vmul.f32 %v1462, %v1479
      %1481 = vrot.lane.b32.xlu0 %v924, 48
      %v1482 = vpop.permute.xlu0 %1481
      %v1485 = vsel %vm932, %v1480, 0
      %1487 = vmatpush.msra.mxu0 0.0
      %1488 = vmatpush.msra.mxu0 0.0
      %1489 = vmatpush.msra.mxu0 0.0
      %1490 = vmatpush.msra.mxu0 0.0
      %1491 = vmatpush.msra.mxu0 0.0
      %1492 = vmatpush.msra.mxu0 0.0
      %1493 = vmatpush.msra.mxu0 0.0
      %1494 = vmatpush.msra.mxu0 0.0
      %1495 = vmatpush.msra.mxu0 0.0
      %1496 = vmatpush.msra.mxu0 0.0
      %1497 = vmatpush.msra.mxu0 0.0
      %1498 = vmatpush.msra.mxu0 0.0
      %1499 = vmatpush.msra.mxu0 0.0
      %1500 = vmatpush.msra.mxu0 0.0
      %1501 = vmatpush.msra.mxu0 0.0
      %1502 = vmatpush.msra.mxu0 %v1482
      %1503 = vmatmul.f32.gmra.mxu0 %v1485
      %v1504 = vpop.f32.mrf.mxu0
      %v1505 = vadd.f32 0.0, %v1504
      %1506 = vdwg.mxu0
      %1507 = vrot.lane.b32.xlu0 %v924, 104
      %v1508 = vpop.permute.xlu0 %1507
      %1509 = vrot.lane.b32.xlu0 %v924, 72
      %v1510 = vpop.permute.xlu0 %1509
      %v1511 = vsel %vm932, %v1508, 0
      %v1513 = vsel %vm932, %v1510, 0
      %1515 = vmatpush.xpose.msra.mxu0 0.0
      %1516 = vmatpush.xpose.msra.mxu0 0.0
      %1517 = vmatpush.xpose.msra.mxu0 0.0
      %1518 = vmatpush.xpose.msra.mxu0 0.0
      %1519 = vmatpush.xpose.msra.mxu0 0.0
      %1520 = vmatpush.xpose.msra.mxu0 0.0
      %1521 = vmatpush.xpose.msra.mxu0 0.0
      %1522 = vmatpush.xpose.msra.mxu0 0.0
      %1523 = vmatpush.xpose.msra.mxu0 0.0
      %1524 = vmatpush.xpose.msra.mxu0 0.0
      %1525 = vmatpush.xpose.msra.mxu0 0.0
      %1526 = vmatpush.xpose.msra.mxu0 0.0
      %1527 = vmatpush.xpose.msra.mxu0 0.0
      %1528 = vmatpush.xpose.msra.mxu0 0.0
      %1529 = vmatpush.xpose.msra.mxu0 0.0
      %1530 = vmatpush.xpose.msra.mxu0 %v1513
      %1531 = vmatmul.f32.gmra.mxu0 %v1511
      %v1532 = vpop.f32.mrf.mxu0
      %v1533 = vadd.f32 0.0, %v1532
      %1534 = vdwg.mxu0
      %v1535 = vmul.f32 %v1533, 0.35355338
      %v1536 = vadd.f32 %v1535, %v1295
      %v1537 = vsel %vm932, %v1536, -inf
      %1538 = vmax.xlane.f32.xlu0 %v1537
      %v1539 = vpop.xlane.xlu0 %1538
      %v1540 = vsub.f32 %v1536, %v1539
      %v1541 = vmul.f32 %v1540, 1.442695
      %v1542 = vpow.pop %v1541
      %v1543 = vsel %vm932, %v1542, 0.0
      %1544 = vadd.xlane.f32.xlu0 %v1543
      %v1545 = vpop.xlane.xlu0 %1544
      %v1546 = vrcp.pop %v1545
      %v1547 = vmul.f32 %v1545, %v1546
      %v1548 = vsub.f32 1.0, %v1547
      %v1549 = vmul.f32 %v1546, %v1548
      %v1550 = vadd.f32 %v1546, %v1549
      %vm1551 = vweird.f32 %v1545
      %vm1552 = vweird.f32 %v1546
      %vm1553 = vmor %vm1551, %vm1552
      %v1554 = vsel %vm1553, %v1546, %v1550
      %v1555 = vand.u32 2147483647, %v1545
      %vm1556 = vcmp.eq.f32.partialorder %v1555, 8.507059e+37
      %v1557 = vand.u32 %v1545, 2147483648
      %v1558 = vor.u32 1.1754944e-38, %v1557
      %v1559 = vsel %vm1556, %v1558, %v1554
      %v1560 = vmul.f32 %v1542, %v1559
      %1561 = vrot.lane.b32.xlu0 %v924, 40
      %v1562 = vpop.permute.xlu0 %1561
      %v1565 = vsel %vm932, %v1560, 0
      %1567 = vmatpush.msra.mxu0 0.0
      %1568 = vmatpush.msra.mxu0 0.0
      %1569 = vmatpush.msra.mxu0 0.0
      %1570 = vmatpush.msra.mxu0 0.0
      %1571 = vmatpush.msra.mxu0 0.0
      %1572 = vmatpush.msra.mxu0 0.0
      %1573 = vmatpush.msra.mxu0 0.0
      %1574 = vmatpush.msra.mxu0 0.0
      %1575 = vmatpush.msra.mxu0 0.0
      %1576 = vmatpush.msra.mxu0 0.0
      %1577 = vmatpush.msra.mxu0 0.0
      %1578 = vmatpush.msra.mxu0 0.0
      %1579 = vmatpush.msra.mxu0 0.0
      %1580 = vmatpush.msra.mxu0 0.0
      %1581 = vmatpush.msra.mxu0 0.0
      %1582 = vmatpush.msra.mxu0 %v1562
      %1583 = vmatmul.f32.gmra.mxu0 %v1565
      %v1584 = vpop.f32.mrf.mxu0
      %v1585 = vadd.f32 0.0, %v1584
      %1586 = vdwg.mxu0
      %1588 = vrot.lane.b32.xlu0 %v1425, 8
      %v1589 = vpop.permute.xlu0 %1588
      %1592 = vrot.lane.b32.xlu0 %v1505, 16
      %v1593 = vpop.permute.xlu0 %1592
      %1596 = vrot.lane.b32.xlu0 %v1585, 24
      %v1597 = vpop.permute.xlu0 %1596
      %v1599 = vsel %vm932, %v1345, %v1589
      %v1600 = vsel %vm1263, %v1599, %v1593
      %v1601 = vsel %vm1265, %v1600, %v1597
      %v1602 = vld [vmem:[%s782] sm:$0xff]
      %v1603 = vld [vmem:[%s782 + $0x8] sm:$0xff]
      %v1604 = vld [vmem:[%s782 + $0x10] sm:$0xff]
      %v1605 = vld [vmem:[%s782 + $0x18] sm:$0xff]
      %v1606 = vld [vmem:[%s785] sm:$0x1]
      %v1608 = vperm.slane %v1606, 0
      %v1611 = vsel %vm896, %v1266, 0
      %v1614 = vsel %vm896, %v1601, 0
      %1616 = vmatpush.msra.mxu0 0.0
      %1617 = vmatpush.msra.mxu0 0.0
      %1618 = vmatpush.msra.mxu0 0.0
      %1619 = vmatpush.msra.mxu0 0.0
      %1620 = vmatpush.msra.mxu0 0.0
      %1621 = vmatpush.msra.mxu0 0.0
      %1622 = vmatpush.msra.mxu0 0.0
      %1623 = vmatpush.msra.mxu0 0.0
      %1624 = vmatpush.msra.mxu0 0.0
      %1625 = vmatpush.msra.mxu0 0.0
      %1626 = vmatpush.msra.mxu0 0.0
      %1627 = vmatpush.msra.mxu0 0.0
      %1628 = vmatpush.msra.mxu0 %v1605
      %1629 = vmatpush.msra.mxu0 %v1604
      %1630 = vmatpush.msra.mxu0 %v1603
      %1631 = vmatpush.msra.mxu0 %v1602
      %1632 = vmatmul.f32.gmra.mxu0 %v1611
      %v1633 = vpop.f32.mrf.mxu0
      %v1634 = vadd.f32 %v1608, %v1633
      %1635 = vmatmul.f32.gmra.mxu0 %v1614
      %v1636 = vpop.f32.mrf.mxu0
      %v1637 = vadd.f32 %v1608, %v1636
      %1638 = vdwg.mxu0
      %v1639 = vadd.f32 %v1634, %v886
      %v1640 = vadd.f32 %v1637, %v887
      %v1641 = vld [vmem:[%s788] sm:$0x1]
      %v1642 = vld [vmem:[%s791] sm:$0x1]
      %v1643 = vsel %vm896, %v1639, 0.0
      %1644 = vadd.xlane.f32.xlu0 %v1643
      %v1645 = vpop.xlane.xlu0 %1644
      %v1646 = vsel %vm896, %v1640, 0.0
      %1647 = vadd.xlane.f32.xlu0 %v1646
      %v1648 = vpop.xlane.xlu0 %1647
      %v1649 = vrcp.pop 32.0
      %v1650 = vmul.f32 32.0, %v1649
      %v1651 = vsub.f32 1.0, %v1650
      %v1652 = vmul.f32 %v1649, %v1651
      %v1653 = vadd.f32 %v1649, %v1652
      %vm1654 = vweird.f32 %v1649
      %v1655 = vsel %vm1654, %v1649, %v1653
      %v1656 = vmul.f32 %v1645, %v1655
      %v1657 = vmul.f32 %v1648, %v1655
      %v1658 = vsub.f32 %v1639, %v1656
      %v1659 = vsub.f32 %v1640, %v1657
      %v1660 = vmul.f32 %v1658, %v1658
      %v1661 = vmul.f32 %v1659, %v1659
      %v1662 = vsel %vm896, %v1660, 0.0
      %1663 = vadd.xlane.f32.xlu0 %v1662
      %v1664 = vpop.xlane.xlu0 %1663
      %v1665 = vsel %vm896, %v1661, 0.0
      %1666 = vadd.xlane.f32.xlu0 %v1665
      %v1667 = vpop.xlane.xlu0 %1666
      %v1668 = vmul.f32 %v1664, %v1655
      %v1669 = vmul.f32 %v1667, %v1655
      %v1670 = vadd.f32 %v1668, 1e-05
      %v1671 = vadd.f32 %v1669, 1e-05
      %v1672 = vrsqrt.pop %v1670
      %v1673 = vmul.f32 %v1672, %v1670
      %v1674 = vmul.f32 %v1673, %v1672
      %v1675 = vmul.f32 0.5, %v1674
      %v1676 = vsub.f32 1.5, %v1675
      %v1677 = vmul.f32 %v1672, %v1676
      %vm1678 = vweird.f32 %v1670
      %vm1679 = vweird.f32 %v1672
      %vm1680 = vmor %vm1678, %vm1679
      %v1681 = vsel %vm1680, %v1672, %v1677
      %v1682 = vrsqrt.pop %v1671
      %v1683 = vmul.f32 %v1682, %v1671
      %v1684 = vmul.f32 %v1683, %v1682
      %v1685 = vmul.f32 0.5, %v1684
      %v1686 = vsub.f32 1.5, %v1685
      %v1687 = vmul.f32 %v1682, %v1686
      %vm1688 = vweird.f32 %v1671
      %vm1689 = vweird.f32 %v1682
      %vm1690 = vmor %vm1688, %vm1689
      %v1691 = vsel %vm1690, %v1682, %v1687
      %v1692 = vmul.f32 %v1658, %v1681
      %v1693 = vmul.f32 %v1659, %v1691
      %v1695 = vperm.slane %v1641, 0
      %v1697 = vmul.f32 %v1692, %v1695
      %v1698 = vmul.f32 %v1693, %v1695
      %v1700 = vperm.slane %v1642, 0
      %v1702 = vadd.f32 %v1697, %v1700
      %v1703 = vadd.f32 %v1698, %v1700
      %v1704 = vld [vmem:[%s796] sm:$0xff]
      %v1705 = vld [vmem:[%s796 + $0x8] sm:$0xff]
      %v1706 = vld [vmem:[%s796 + $0x10] sm:$0xff]
      %v1707 = vld [vmem:[%s796 + $0x18] sm:$0xff]
      %v1708 = vld [vmem:[%s799] sm:$0x1]
      %v1710 = vperm.slane %v1708, 0
      %v1713 = vsel %vm896, %v1702, 0
      %v1716 = vsel %vm896, %v1703, 0
      %1718 = vmatpush.msra.mxu0 0.0
      %1719 = vmatpush.msra.mxu0 0.0
      %1720 = vmatpush.msra.mxu0 0.0
      %1721 = vmatpush.msra.mxu0 0.0
      %1722 = vmatpush.msra.mxu0 0.0
      %1723 = vmatpush.msra.mxu0 0.0
      %1724 = vmatpush.msra.mxu0 0.0
      %1725 = vmatpush.msra.mxu0 0.0
      %1726 = vmatpush.msra.mxu0 0.0
      %1727 = vmatpush.msra.mxu0 0.0
      %1728 = vmatpush.msra.mxu0 0.0
      %1729 = vmatpush.msra.mxu0 0.0
      %1730 = vmatpush.msra.mxu0 %v1707
      %1731 = vmatpush.msra.mxu0 %v1706
      %1732 = vmatpush.msra.mxu0 %v1705
      %1733 = vmatpush.msra.mxu0 %v1704
      %1734 = vmatmul.f32.gmra.mxu0 %v1713
      %v1735 = vpop.f32.mrf.mxu0
      %v1736 = vadd.f32 %v1710, %v1735
      %1737 = vmatmul.f32.gmra.mxu0 %v1716
      %v1738 = vpop.f32.mrf.mxu0
      %v1739 = vadd.f32 %v1710, %v1738
      %1740 = vdwg.mxu0
      %v1741 = vmul.f32 %v1736, 0.5
      %v1742 = vmul.f32 %v1739, 0.5
      %v1743 = vmul.f32 %v1736, 0.70710677
      %v1744 = vmul.f32 %v1739, 0.70710677
      %v1745 = vand.u32 2147483647, %v1743
      %v1746 = vand.u32 2147483647, %v1744
      %v1747 = vmul.f32 %v1745, 0.3275911
      %v1748 = vmul.f32 %v1746, 0.3275911
      %v1749 = vadd.f32 %v1747, 1.0
      %v1750 = vadd.f32 %v1748, 1.0
      %v1751 = vrcp.pop %v1749
      %v1752 = vmul.f32 %v1749, %v1751
      %v1753 = vsub.f32 1.0, %v1752
      %v1754 = vmul.f32 %v1751, %v1753
      %v1755 = vadd.f32 %v1751, %v1754
      %vm1756 = vweird.f32 %v1749
      %vm1757 = vweird.f32 %v1751
      %vm1758 = vmor %vm1756, %vm1757
      %v1759 = vsel %vm1758, %v1751, %v1755
      %v1760 = vand.u32 2147483647, %v1749
      %vm1761 = vcmp.eq.f32.partialorder %v1760, 8.507059e+37
      %v1762 = vand.u32 %v1749, 2147483648
      %v1763 = vor.u32 1.1754944e-38, %v1762
      %v1764 = vsel %vm1761, %v1763, %v1759
      %v1765 = vmul.f32 1.0, %v1764
      %v1766 = vrcp.pop %v1750
      %v1767 = vmul.f32 %v1750, %v1766
      %v1768 = vsub.f32 1.0, %v1767
      %v1769 = vmul.f32 %v1766, %v1768
      %v1770 = vadd.f32 %v1766, %v1769
      %vm1771 = vweird.f32 %v1750
      %vm1772 = vweird.f32 %v1766
      %vm1773 = vmor %vm1771, %vm1772
      %v1774 = vsel %vm1773, %v1766, %v1770
      %v1775 = vand.u32 2147483647, %v1750
      %vm1776 = vcmp.eq.f32.partialorder %v1775, 8.507059e+37
      %v1777 = vand.u32 %v1750, 2147483648
      %v1778 = vor.u32 1.1754944e-38, %v1777
      %v1779 = vsel %vm1776, %v1778, %v1774
      %v1780 = vmul.f32 1.0, %v1779
      %v1781 = vmul.f32 %v1765, 1.0614054
      %v1782 = vmul.f32 %v1780, 1.0614054
      %v1783 = vadd.f32 %v1781, -1.4531521
      %v1784 = vadd.f32 %v1782, -1.4531521
      %v1785 = vmul.f32 %v1783, %v1765
      %v1786 = vmul.f32 %v1784, %v1780
      %v1787 = vadd.f32 %v1785, 1.4214138
      %v1788 = vadd.f32 %v1786, 1.4214138
      %v1789 = vmul.f32 %v1787, %v1765
      %v1790 = vmul.f32 %v1788, %v1780
      %v1791 = vadd.f32 %v1789, -0.28449672
      %v1792 = vadd.f32 %v1790, -0.28449672
      %v1793 = vmul.f32 %v1791, %v1765
      %v1794 = vmul.f32 %v1792, %v1780
      %v1795 = vadd.f32 %v1793, 0.2548296
      %v1796 = vadd.f32 %v1794, 0.2548296
      %v1797 = vmul.f32 %v1795, %v1765
      %v1798 = vmul.f32 %v1796, %v1780
      %v1799 = vsub.f32 0.0, %v1745
      %v1800 = vsub.f32 0.0, %v1746
      %v1801 = vmul.f32 %v1799, %v1745
      %v1802 = vmul.f32 %v1800, %v1746
      %v1803 = vmul.f32 %v1801, 1.442695
      %v1804 = vpow.pop %v1803
      %v1805 = vmul.f32 %v1802, 1.442695
      %v1806 = vpow.pop %v1805
      %v1807 = vmul.f32 %v1797, %v1804
      %v1808 = vmul.f32 %v1798, %v1806
      %v1809 = vsub.f32 1.0, %v1807
      %v1810 = vsub.f32 1.0, %v1808
      %vm1811 = vcmp.lt.f32.partialorder %v1743, 0.0
      %vm1812 = vcmp.lt.f32.partialorder %v1744, 0.0
      %v1813 = vsub.f32 0.0, %v1809
      %v1814 = vsub.f32 0.0, %v1810
      %v1815 = vsel %vm1811, %v1813, %v1809
      %v1816 = vsel %vm1812, %v1814, %v1810
      %v1817 = vadd.f32 %v1815, 1.0
      %v1818 = vadd.f32 %v1816, 1.0
      %v1819 = vmul.f32 %v1741, %v1817
      %v1820 = vmul.f32 %v1742, %v1818
      %v1821 = vld [vmem:[%s804] sm:$0xff]
      %v1822 = vld [vmem:[%s804 + $0x8] sm:$0xff]
      %v1823 = vld [vmem:[%s804 + $0x10] sm:$0xff]
      %v1824 = vld [vmem:[%s804 + $0x18] sm:$0xff]
      %v1825 = vld [vmem:[%s804 + $0x20] sm:$0xff]
      %v1826 = vld [vmem:[%s804 + $0x28] sm:$0xff]
      %v1827 = vld [vmem:[%s804 + $0x30] sm:$0xff]
      %v1828 = vld [vmem:[%s804 + $0x38] sm:$0xff]
      %v1829 = vld [vmem:[%s807] sm:$0x1]
      %v1831 = vperm.slane %v1829, 0
      %vm1833 = vcmask 523264
      %v1835 = vsel %vm1833, %v1819, 0
      %v1838 = vsel %vm1833, %v1820, 0
      %1840 = vmatpush.msra.mxu0 0.0
      %1841 = vmatpush.msra.mxu0 0.0
      %1842 = vmatpush.msra.mxu0 0.0
      %1843 = vmatpush.msra.mxu0 0.0
      %1844 = vmatpush.msra.mxu0 0.0
      %1845 = vmatpush.msra.mxu0 0.0
      %1846 = vmatpush.msra.mxu0 0.0
      %1847 = vmatpush.msra.mxu0 0.0
      %1848 = vmatpush.msra.mxu0 %v1828
      %1849 = vmatpush.msra.mxu0 %v1827
      %1850 = vmatpush.msra.mxu0 %v1826
      %1851 = vmatpush.msra.mxu0 %v1825
      %1852 = vmatpush.msra.mxu0 %v1824
      %1853 = vmatpush.msra.mxu0 %v1823
      %1854 = vmatpush.msra.mxu0 %v1822
      %1855 = vmatpush.msra.mxu0 %v1821
      %1856 = vmatmul.f32.gmra.mxu0 %v1835
      %v1857 = vpop.f32.mrf.mxu0
      %v1858 = vadd.f32 %v1831, %v1857
      %1859 = vmatmul.f32.gmra.mxu0 %v1838
      %v1860 = vpop.f32.mrf.mxu0
      %v1861 = vadd.f32 %v1831, %v1860
      %1862 = vdwg.mxu0
      %v1863 = vadd.f32 %v1858, %v1702
      %v1864 = vadd.f32 %v1861, %v1703
      %v1865 = vld [vmem:[%s810] sm:$0x1]
      %v1866 = vld [vmem:[%s813] sm:$0x1]
      %v1867 = vsel %vm896, %v1863, 0.0
      %1868 = vadd.xlane.f32.xlu0 %v1867
      %v1869 = vpop.xlane.xlu0 %1868
      %v1870 = vsel %vm896, %v1864, 0.0
      %1871 = vadd.xlane.f32.xlu0 %v1870
      %v1872 = vpop.xlane.xlu0 %1871
      %v1873 = vmul.f32 %v1869, %v1655
      %v1874 = vmul.f32 %v1872, %v1655
      %v1875 = vsub.f32 %v1863, %v1873
      %v1876 = vsub.f32 %v1864, %v1874
      %v1877 = vmul.f32 %v1875, %v1875
      %v1878 = vmul.f32 %v1876, %v1876
      %v1879 = vsel %vm896, %v1877, 0.0
      %1880 = vadd.xlane.f32.xlu0 %v1879
      %v1881 = vpop.xlane.xlu0 %1880
      %v1882 = vsel %vm896, %v1878, 0.0
      %1883 = vadd.xlane.f32.xlu0 %v1882
      %v1884 = vpop.xlane.xlu0 %1883
      %v1885 = vmul.f32 %v1881, %v1655
      %v1886 = vmul.f32 %v1884, %v1655
      %v1887 = vadd.f32 %v1885, 1e-05
      %v1888 = vadd.f32 %v1886, 1e-05
      %v1889 = vrsqrt.pop %v1887
      %v1890 = vmul.f32 %v1889, %v1887
      %v1891 = vmul.f32 %v1890, %v1889
      %v1892 = vmul.f32 0.5, %v1891
      %v1893 = vsub.f32 1.5, %v1892
      %v1894 = vmul.f32 %v1889, %v1893
      %vm1895 = vweird.f32 %v1887
      %vm1896 = vweird.f32 %v1889
      %vm1897 = vmor %vm1895, %vm1896
      %v1898 = vsel %vm1897, %v1889, %v1894
      %v1899 = vrsqrt.pop %v1888
      %v1900 = vmul.f32 %v1899, %v1888
      %v1901 = vmul.f32 %v1900, %v1899
      %v1902 = vmul.f32 0.5, %v1901
      %v1903 = vsub.f32 1.5, %v1902
      %v1904 = vmul.f32 %v1899, %v1903
      %vm1905 = vweird.f32 %v1888
      %vm1906 = vweird.f32 %v1899
      %vm1907 = vmor %vm1905, %vm1906
      %v1908 = vsel %vm1907, %v1899, %v1904
      %v1909 = vmul.f32 %v1875, %v1898
      %v1910 = vmul.f32 %v1876, %v1908
      %v1912 = vperm.slane %v1865, 0
      %v1914 = vmul.f32 %v1909, %v1912
      %v1915 = vmul.f32 %v1910, %v1912
      %v1917 = vperm.slane %v1866, 0
      %v1919 = vadd.f32 %v1914, %v1917
      %v1920 = vadd.f32 %v1915, %v1917
      %1921 = vst.msk [vmem:[#allocation2] sm:$0xff] %vm896, %v1919
      %1922 = vst.msk [vmem:[#allocation2 + $0x8] sm:$0xff] %vm896, %v1920
      %p1923 = scmp.eq.s32.totalorder %s32, 1
      // Predicated region
      $region109: #{forward.1} parent=103 // pred_check
        %p1924 = pneg %p1923
      $region110: #{forward.1} parent=103 // pred_check_branch
        %1926 = sbr.rel (%p1924) target = $region112
      $region111: #{forward.1} parent=103 // pred_region
        %v1928 = vrot.slane %v1920, 7
        %vm1930 = vcmask 1040384
        %v1931 = vsel %vm1930, %v1919, %v1928
        %v1932 = vld [vmem:[%s16] sm:$0x3]
        %v1933 = vld [vmem:[%s17] sm:$0xff]
        %v1934 = vld [vmem:[%s17 + $0x8] sm:$0xff]
        %v1935 = vld [vmem:[%s18] sm:$0x1]
        %v1937 = vperm.slane %v1935, 0
        %v1940 = vsel %vm1263, %v1932, 0
        %1942 = vmatpush.msra.mxu0 0.0
        %1943 = vmatpush.msra.mxu0 0.0
        %1944 = vmatpush.msra.mxu0 0.0
        %1945 = vmatpush.msra.mxu0 0.0
        %1946 = vmatpush.msra.mxu0 0.0
        %1947 = vmatpush.msra.mxu0 0.0
        %1948 = vmatpush.msra.mxu0 0.0
        %1949 = vmatpush.msra.mxu0 0.0
        %1950 = vmatpush.msra.mxu0 0.0
        %1951 = vmatpush.msra.mxu0 0.0
        %1952 = vmatpush.msra.mxu0 0.0
        %1953 = vmatpush.msra.mxu0 0.0
        %1954 = vmatpush.msra.mxu0 0.0
        %1955 = vmatpush.msra.mxu0 0.0
        %1956 = vmatpush.msra.mxu0 %v1934
        %1957 = vmatpush.msra.mxu0 %v1933
        %1958 = vmatmul.f32.gmra.mxu0 %v1940
        %v1959 = vpop.f32.mrf.mxu0
        %v1960 = vadd.f32 %v1937, %v1959
        %1961 = vdwg.mxu0
        %v1962 = vld [vmem:[%s19] sm:$0xff]
        %v1963 = vld [vmem:[%s19 + $0x8] sm:$0xff]
        %v1964 = vld [vmem:[%s19 + $0x10] sm:$0xff]
        %v1965 = vld [vmem:[%s19 + $0x18] sm:$0xff]
        %v1966 = vld [vmem:[%s19 + $0x20] sm:$0xff]
        %v1967 = vld [vmem:[%s19 + $0x28] sm:$0xff]
        %v1968 = vld [vmem:[%s19 + $0x30] sm:$0xff]
        %v1969 = vld [vmem:[%s19 + $0x38] sm:$0xff]
        %v1971 = vsel %vm896, %v1960, 0
        %1973 = vmatpush.msra.mxu0 0.0
        %1974 = vmatpush.msra.mxu0 0.0
        %1975 = vmatpush.msra.mxu0 0.0
        %1976 = vmatpush.msra.mxu0 0.0
        %1977 = vmatpush.msra.mxu0 0.0
        %1978 = vmatpush.msra.mxu0 0.0
        %1979 = vmatpush.msra.mxu0 0.0
        %1980 = vmatpush.msra.mxu0 0.0
        %1981 = vmatpush.msra.mxu0 0.0
        %1982 = vmatpush.msra.mxu0 0.0
        %1983 = vmatpush.msra.mxu0 0.0
        %1984 = vmatpush.msra.mxu0 0.0
        %1985 = vmatpush.msra.mxu0 %v1969
        %1986 = vmatpush.msra.mxu0 %v1968
        %1987 = vmatpush.msra.mxu0 %v1967
        %1988 = vmatpush.msra.mxu0 %v1966
        %1989 = vmatmul.f32.gmra.mxu0 %v1971
        %v1990 = vpop.f32.mrf.mxu0
        %v1991 = vadd.f32 0.0, %v1990
        %1992 = vdwg.mxu0
        %v1994 = vsel %vm896, %v1931, 0
        %1996 = vmatpush.msra.mxu0 0.0
        %1997 = vmatpush.msra.mxu0 0.0
        %1998 = vmatpush.msra.mxu0 0.0
        %1999 = vmatpush.msra.mxu0 0.0
        %2000 = vmatpush.msra.mxu0 0.0
        %2001 = vmatpush.msra.mxu0 0.0
        %2002 = vmatpush.msra.mxu0 0.0
        %2003 = vmatpush.msra.mxu0 0.0
        %2004 = vmatpush.msra.mxu0 0.0
        %2005 = vmatpush.msra.mxu0 0.0
        %2006 = vmatpush.msra.mxu0 0.0
        %2007 = vmatpush.msra.mxu0 0.0
        %2008 = vmatpush.msra.mxu0 %v1965
        %2009 = vmatpush.msra.mxu0 %v1964
        %2010 = vmatpush.msra.mxu0 %v1963
        %2011 = vmatpush.msra.mxu0 %v1962
        %2012 = vmatmul.f32.gmra.mxu0 %v1994
        %v2013 = vpop.f32.mrf.mxu0
        %v2014 = vadd.f32 %v1991, %v2013
        %2015 = vdwg.mxu0
        %v2016 = vld [vmem:[%s20] sm:$0x1]
        %v2018 = vperm.slane %v2016, 0
        %v2020 = vadd.f32 %v2014, %v2018
        %vm2021 = vcmask 9216
        %2022 = vst.msk [vmem:[%s21] sm:$0x3] %vm2021, %v2020
      $region112: #{forward.1} parent=103 // pred_fallthru
        _
      // Predicated region
      $region113: #{forward.1} parent=103 // pred_check
        %p2023 = pneg %p546
      $region114: #{forward.1} parent=103 // pred_check_branch
        %2025 = sbr.rel (%p2023) target = $region116
      $region115: #{forward.1} parent=103 // pred_region
        _
      $region116: #{forward.1} parent=103 // pred_fallthru
        _
      // Predicated region
      $region117: #{forward.1} parent=103 // pred_check
        %p2026 = pneg %p546
      $region118: #{forward.1} parent=103 // pred_check_branch
        %2028 = sbr.rel (%p2026) target = $region120
      $region119: #{forward.1} parent=103 // pred_region
        _
      $region120: #{forward.1} parent=103 // pred_fallthru
        _
    $region104: #{forward.1} parent=5 // pred_fallthru
      _
    %p2029 = scmp.le.s32.totalorder 2, %s27
    // Predicated region
    $region121: #{forward.1} parent=5 // pred_check
      %p2030 = pneg %p2029
    $region122: #{forward.1} parent=5 // pred_check_branch
      %2032 = sbr.rel (%p2030) target = $region124
    $region123: #{forward.1} parent=5 // pred_region
      %s2033 = ssub.s32 %s27, 2
    $region124: #{forward.1} parent=5 // pred_fallthru
      _
  $region6: #{forward.1} parent=0 // loop_footer
    %s31 = sadd.s32 1, %s27
  $region7: #{forward.1} parent=0 // loop_footer_branch
    %26 = sbr.rel target = $region3
  $region8: #{forward.1} parent=0 // loop_exit
    _

</llo_original>
